<compile_context>
chip_gen: v5e
topology: v5e:2x2
jax: 0.10.0
libtpu: 0.0.40
codegen_flags: <defaults>
</compile_context>

<pallas_src>
import functools

import jax
import jax.numpy as jnp
from jax import lax
from jax.experimental import pallas as pl
from jax.experimental.pallas import tpu as pltpu


# ----------------------------- helpers -------------------------------------

def _round_up(n, m):
    return ((n + m - 1) // m) * m


def _softplus(x):
    # Numerically stable softplus (matches torch.nn.functional.softplus to
    # f32 precision).  Avoids log1p to keep the Mosaic lowering simple.
    return jnp.maximum(x, 0.0) + jnp.log(1.0 + jnp.exp(-jnp.abs(x)))


def _masked_kl_sum(mu, rho, n_rows, n_cols):
    """sum KL( N(mu, softplus(rho)^2) || N(0,1) ) over the [:n_rows,:n_cols]
    sub-block of padded (mu, rho) tiles (zero-padding masked out)."""
    rp, cp = mu.shape
    sigma = _softplus(rho)
    kl = -jnp.log(sigma) + 0.5 * (sigma * sigma + mu * mu) - 0.5
    if n_rows < rp or n_cols < cp:
        rmask = lax.broadcasted_iota(jnp.int32, (rp, cp), 0) < n_rows
        cmask = lax.broadcasted_iota(jnp.int32, (rp, cp), 1) < n_cols
        kl = jnp.where(rmask & cmask, kl, 0.0)
    return jnp.sum(kl)


# ----------------------------- Pallas kernel -------------------------------

def _fused_bmlp_kernel(x_ref, *refs, n_layers, true_dims, pad_dims,
                       bias_offsets):
    """refs = [ (wT_mu_i, wT_rho_i) * n_layers, bias_mu_packed,
               bias_rho_packed, y_out, kl_out ]."""
    w_refs = refs[:2 * n_layers]
    bmu_ref = refs[2 * n_layers]
    brho_ref = refs[2 * n_layers + 1]
    y_ref = refs[2 * n_layers + 2]
    kl_ref = refs[2 * n_layers + 3]

    # ---- forward pass on this batch tile (activations stay vreg/VMEM) ----
    x = x_ref[...]                                         # (TB, in_pad) f32
    for li in range(n_layers):
        din_p, dout_p = pad_dims[li]
        off = bias_offsets[li]
        w = w_refs[2 * li][...]                            # (din_p, dout_p) f32
        b = bmu_ref[0:1, off:off + dout_p]                 # (1, dout_p) f32
        # bf16 MXU matmul, f32 accumulation; (in, out) layout -> contract (1,0)
        y = lax.dot_general(x.astype(jnp.bfloat16), w.astype(jnp.bfloat16),
                            (((1,), (0,)), ((), ())),
                            preferred_element_type=jnp.float32)
        y = y + b                                          # bias over rows
        if li < n_layers - 1:                              # acts=None -> ReLU
            y = jnp.maximum(y, 0.0)
        x = y
    y_ref[...] = x.astype(y_ref.dtype)

    # ---- KL term: computed exactly once, on already-resident weights ----
    step = pl.program_id(0)

    @pl.when(step == 0)
    def _():
        kl = jnp.float32(0.0)
        for li in range(n_layers):
            din, dout = true_dims[li]
            din_p, dout_p = pad_dims[li]
            off = bias_offsets[li]
            kl = kl + _masked_kl_sum(w_refs[2 * li][...],
                                     w_refs[2 * li + 1][...], din, dout)
            kl = kl + _masked_kl_sum(bmu_ref[0:1, off:off + dout_p],
                                     brho_ref[0:1, off:off + dout_p], 1, dout)
        kl_ref[...] = jnp.zeros((8, 128), jnp.float32) + kl

    @pl.when(step != 0)
    def _():
        kl_ref[...] = jnp.zeros((8, 128), jnp.float32)


# ----------------------------- parameter packing ---------------------------

def init_bayes_mlp_params(key, input_dim, hidden_dims):
    """BayesLinear params per layer, PyTorch layout: weight mu/rho (out, in),
    bias mu/rho (out,)."""
    in_dims = [input_dim] + list(hidden_dims[:-1])
    params = []
    for din, dout in zip(in_dims, hidden_dims):
        key, k1, k2 = jax.random.split(key, 3)
        params.append(dict(
            w_mu=jax.random.normal(k1, (dout, din), jnp.float32) * 0.1,
            w_rho=jnp.full((dout, din), -3.0, jnp.float32),
            b_mu=jax.random.normal(k2, (dout,), jnp.float32) * 0.1,
            b_rho=jnp.full((dout,), -3.0, jnp.float32),
        ))
    return params


def pack_params_for_kernel(params, input_dim):
    """One-time prep (NOT per call): transpose weights to (in, out), zero-pad
    feature dims to multiples of 128 (lane-dense), pack all biases into two
    (1, total) rows.  Returns (arrays, static_meta)."""
    in_dims = [input_dim] + [p["w_mu"].shape[0] for p in params[:-1]]
    weights, true_dims, pad_dims, bias_offsets = [], [], [], []
    bmu_parts, brho_parts = [], []
    off = 0
    for p, din in zip(params, in_dims):
        dout = p["w_mu"].shape[0]
        din_p, dout_p = _round_up(din, 128), _round_up(dout, 128)
        wT_mu = jnp.zeros((din_p, dout_p), jnp.float32).at[:din, :dout].set(p["w_mu"].T)
        wT_rho = jnp.zeros((din_p, dout_p), jnp.float32).at[:din, :dout].set(p["w_rho"].T)
        weights += [wT_mu, wT_rho]
        bmu_parts.append(jnp.zeros((dout_p,), jnp.float32).at[:dout].set(p["b_mu"]))
        brho_parts.append(jnp.zeros((dout_p,), jnp.float32).at[:dout].set(p["b_rho"]))
        true_dims.append((din, dout))
        pad_dims.append((din_p, dout_p))
        bias_offsets.append(off)
        off += dout_p
    arrays = dict(weights=weights,
                  bias_mu=jnp.concatenate(bmu_parts).reshape(1, -1),
                  bias_rho=jnp.concatenate(brho_parts).reshape(1, -1))
    meta = dict(input_dim=input_dim, out_dim=params[-1]["w_mu"].shape[0],
                true_dims=tuple(true_dims), pad_dims=tuple(pad_dims),
                bias_offsets=tuple(bias_offsets))
    return arrays, meta


# ----------------------------- wrapper --------------------------------------

def bayes_mlp_forward(x, arrays, meta, *, block_b=256):
    """Deterministic (sample=False) BayesMLP forward. Returns (X, loss_kl)."""
    input_dim = meta["input_dim"]
    out_dim = meta["out_dim"]
    true_dims = meta["true_dims"]
    pad_dims = meta["pad_dims"]
    bias_offsets = meta["bias_offsets"]
    n_layers = len(true_dims)
    in_pad = pad_dims[0][0]
    out_pad = pad_dims[-1][1]

    X = x.reshape(-1, input_dim)
    B = X.shape[0]
    TB = min(_round_up(block_b, 8), _round_up(B, 8))
    B_pad = _round_up(B, TB)
    num_tiles = B_pad // TB

    if B == B_pad and input_dim == in_pad:
        Xp = X
    else:
        Xp = jnp.zeros((B_pad, in_pad), jnp.float32).at[:B, :input_dim].set(X)

    operands = [Xp] + list(arrays["weights"]) + [arrays["bias_mu"],
                                                 arrays["bias_rho"]]

    in_specs = [pl.BlockSpec((TB, in_pad), lambda i: (i, 0))]
    for w in arrays["weights"]:
        in_specs.append(pl.BlockSpec(w.shape, lambda i: (0, 0)))      # resident
    total_b = arrays["bias_mu"].shape[1]
    in_specs.append(pl.BlockSpec((1, total_b), lambda i: (0, 0)))     # resident
    in_specs.append(pl.BlockSpec((1, total_b), lambda i: (0, 0)))     # resident

    out_shape = (jax.ShapeDtypeStruct((B_pad, out_pad), jnp.float32),
                 jax.ShapeDtypeStruct((num_tiles * 8, 128), jnp.float32))
    out_specs = (pl.BlockSpec((TB, out_pad), lambda i: (i, 0)),
                 pl.BlockSpec((8, 128), lambda i: (i, 0)))

    # Explicit VMEM budget: resident weights/biases + double-buffered tiles.
    weight_bytes = sum(w.size * 4 for w in arrays["weights"]) + 2 * 4 * total_b
    max_act = max(d for _, d in pad_dims)
    tile_bytes = 4 * TB * (in_pad + out_pad + 2 * max_act) * 2
    vmem_limit = int(min(max(weight_bytes + tile_bytes + (4 << 20), 32 << 20),
                         64 << 20))

    n_param = sum(din * dout + dout for din, dout in true_dims)
    flops = sum(2 * B_pad * dp * op for dp, op in pad_dims)
    cost = pl.CostEstimate(
        flops=flops + 8 * n_param,
        transcendentals=3 * n_param,                 # exp + log + log per KL elem
        bytes_accessed=4 * (Xp.size + weight_bytes // 4 + B_pad * out_pad),
    )

    kernel = functools.partial(_fused_bmlp_kernel, n_layers=n_layers,
                               true_dims=true_dims, pad_dims=pad_dims,
                               bias_offsets=bias_offsets)

    y_pad, kl_out = pl.pallas_call(
        kernel,
        grid=(num_tiles,),
        out_shape=out_shape,
        in_specs=in_specs,
        out_specs=out_specs,
        compiler_params=pltpu.CompilerParams(
            dimension_semantics=("parallel",),
            vmem_limit_bytes=vmem_limit),
        cost_estimate=cost,
    )(*operands)

    return y_pad[:B, :out_dim], kl_out[0, 0]


# ----------------------------- reference (plain JAX) -----------------------

def _reference(x, params, input_dim):
    X = x.reshape(-1, input_dim)
    kl = jnp.zeros((), jnp.float32)
    n = len(params)
    for i, p in enumerate(params):
        X = X @ p["w_mu"].T + p["b_mu"]
        if i < n - 1:
            X = jnp.maximum(X, 0.0)
        for mu, rho in ((p["w_mu"], p["w_rho"]), (p["b_mu"], p["b_rho"])):
            sigma = jnp.maximum(rho, 0.0) + jnp.log1p(jnp.exp(-jnp.abs(rho)))
            kl = kl + jnp.sum(-jnp.log(sigma) + 0.5 * (sigma * sigma + mu * mu) - 0.5)
    return X, kl


if __name__ == "__main__":
    key = jax.random.PRNGKey(0)
    input_dim = 32
    hidden_dims = [64, 32, 8]
    batch = 48                     # small, but multi-tile with block_b=16

    kx, kp = jax.random.split(key)
    x = jax.random.normal(kx, (batch, input_dim), jnp.float32)
    params = init_bayes_mlp_params(kp, input_dim, hidden_dims)
    arrays, meta = pack_params_for_kernel(params, input_dim)   # one-time prep

    fwd = jax.jit(lambda x_, a_: bayes_mlp_forward(x_, a_, meta, block_b=16))
    y, loss_kl = fwd(x, arrays)
    jax.block_until_ready((y, loss_kl))

    y_ref, kl_ref = _reference(x, params, input_dim)
    assert y.shape == (batch, hidden_dims[-1])
    # bf16 MXU matmul -> relaxed tolerance on y; KL stays f32.
    assert jnp.allclose(y, y_ref, atol=3e-2, rtol=3e-2), "output mismatch"
    assert jnp.allclose(loss_kl, kl_ref, atol=1e-1, rtol=1e-3), "KL mismatch"

    print("KERNEL_OK")
</pallas_src>

<mosaic_0001>
module attributes {stable_mosaic.version = 11 : i64} {
  func.func @_fused_bmlp_kernel(%arg0: i32, %arg1: memref<16x128xf32, #tpu.memory_space<vmem>>, %arg2: memref<128x128xf32, #tpu.memory_space<vmem>>, %arg3: memref<128x128xf32, #tpu.memory_space<vmem>>, %arg4: memref<128x128xf32, #tpu.memory_space<vmem>>, %arg5: memref<128x128xf32, #tpu.memory_space<vmem>>, %arg6: memref<128x128xf32, #tpu.memory_space<vmem>>, %arg7: memref<128x128xf32, #tpu.memory_space<vmem>>, %arg8: memref<1x384xf32, #tpu.memory_space<vmem>>, %arg9: memref<1x384xf32, #tpu.memory_space<vmem>>, %arg10: memref<16x128xf32, #tpu.memory_space<vmem>>, %arg11: memref<8x128xf32, #tpu.memory_space<vmem>>) attributes {dimension_semantics = [#tpu.dimension_semantics<parallel>], iteration_bounds = array<i64: 3>, scalar_prefetch = 0 : i64, scratch_operands = 0 : i64, tpu.core_type = #tpu.core_type<tc>, window_params = [{transform_indices = @transform_0, window_bounds = array<i64: 16, 128>}, {pipeline_mode = #tpu.pipeline_mode<synchronous>, transform_indices = @transform_1, window_bounds = array<i64: 128, 128>}, {pipeline_mode = #tpu.pipeline_mode<synchronous>, transform_indices = @transform_2, window_bounds = array<i64: 128, 128>}, {pipeline_mode = #tpu.pipeline_mode<synchronous>, transform_indices = @transform_3, window_bounds = array<i64: 128, 128>}, {pipeline_mode = #tpu.pipeline_mode<synchronous>, transform_indices = @transform_4, window_bounds = array<i64: 128, 128>}, {pipeline_mode = #tpu.pipeline_mode<synchronous>, transform_indices = @transform_5, window_bounds = array<i64: 128, 128>}, {pipeline_mode = #tpu.pipeline_mode<synchronous>, transform_indices = @transform_6, window_bounds = array<i64: 128, 128>}, {pipeline_mode = #tpu.pipeline_mode<synchronous>, transform_indices = @transform_7, window_bounds = array<i64: 1, 384>}, {pipeline_mode = #tpu.pipeline_mode<synchronous>, transform_indices = @transform_8, window_bounds = array<i64: 1, 384>}, {transform_indices = @transform_9, window_bounds = array<i64: 16, 128>}, {transform_indices = @transform_10, window_bounds = array<i64: 8, 128>}]} {
    %c0 = arith.constant 0 : index
    %c0_0 = arith.constant 0 : index
    %0 = vector.load %arg1[%c0, %c0_0] : memref<16x128xf32, #tpu.memory_space<vmem>>, vector<16x128xf32>
    %c0_1 = arith.constant 0 : index
    %c0_2 = arith.constant 0 : index
    %1 = vector.load %arg2[%c0_1, %c0_2] : memref<128x128xf32, #tpu.memory_space<vmem>>, vector<128x128xf32>
    %c0_3 = arith.constant 0 : index
    %c0_4 = arith.constant 0 : index
    %2 = vector.load %arg8[%c0_3, %c0_4] : memref<1x384xf32, #tpu.memory_space<vmem>>, vector<1x128xf32>
    %3 = arith.truncf %0 : vector<16x128xf32> to vector<16x128xbf16>
    %4 = arith.truncf %1 : vector<128x128xf32> to vector<128x128xbf16>
    %cst = arith.constant dense<0.000000e+00> : vector<16x128xf32>
    %5 = tpu.matmul %3, %4, %cst {dimension_numbers = #tpu.dot_dimension_numbers<[1], [0], [0], [1], [0, 0, 1, 1], [], []>} : vector<16x128xbf16>, vector<128x128xbf16>, vector<16x128xf32> -> vector<16x128xf32>
    %6 = vector.broadcast %2 : vector<1x128xf32> to vector<16x128xf32>
    %7 = arith.addf %5, %6 : vector<16x128xf32>
    %cst_5 = arith.constant 0.000000e+00 : f32
    %8 = vector.broadcast %cst_5 : f32 to vector<16x128xf32>
    %9 = arith.maximumf %7, %8 : vector<16x128xf32>
    %c0_6 = arith.constant 0 : index
    %c0_7 = arith.constant 0 : index
    %10 = vector.load %arg4[%c0_6, %c0_7] : memref<128x128xf32, #tpu.memory_space<vmem>>, vector<128x128xf32>
    %c0_8 = arith.constant 0 : index
    %c128 = arith.constant 128 : index
    %11 = vector.load %arg8[%c0_8, %c128] : memref<1x384xf32, #tpu.memory_space<vmem>>, vector<1x128xf32>
    %12 = arith.truncf %9 : vector<16x128xf32> to vector<16x128xbf16>
    %13 = arith.truncf %10 : vector<128x128xf32> to vector<128x128xbf16>
    %cst_9 = arith.constant dense<0.000000e+00> : vector<16x128xf32>
    %14 = tpu.matmul %12, %13, %cst_9 {dimension_numbers = #tpu.dot_dimension_numbers<[1], [0], [0], [1], [0, 0, 1, 1], [], []>} : vector<16x128xbf16>, vector<128x128xbf16>, vector<16x128xf32> -> vector<16x128xf32>
    %15 = vector.broadcast %11 : vector<1x128xf32> to vector<16x128xf32>
    %16 = arith.addf %14, %15 : vector<16x128xf32>
    %cst_10 = arith.constant 0.000000e+00 : f32
    %17 = vector.broadcast %cst_10 : f32 to vector<16x128xf32>
    %18 = arith.maximumf %16, %17 : vector<16x128xf32>
    %c0_11 = arith.constant 0 : index
    %c0_12 = arith.constant 0 : index
    %19 = vector.load %arg6[%c0_11, %c0_12] : memref<128x128xf32, #tpu.memory_space<vmem>>, vector<128x128xf32>
    %c0_13 = arith.constant 0 : index
    %c256 = arith.constant 256 : index
    %20 = vector.load %arg8[%c0_13, %c256] : memref<1x384xf32, #tpu.memory_space<vmem>>, vector<1x128xf32>
    %21 = arith.truncf %18 : vector<16x128xf32> to vector<16x128xbf16>
    %22 = arith.truncf %19 : vector<128x128xf32> to vector<128x128xbf16>
    %cst_14 = arith.constant dense<0.000000e+00> : vector<16x128xf32>
    %23 = tpu.matmul %21, %22, %cst_14 {dimension_numbers = #tpu.dot_dimension_numbers<[1], [0], [0], [1], [0, 0, 1, 1], [], []>} : vector<16x128xbf16>, vector<128x128xbf16>, vector<16x128xf32> -> vector<16x128xf32>
    %24 = vector.broadcast %20 : vector<1x128xf32> to vector<16x128xf32>
    %25 = arith.addf %23, %24 : vector<16x128xf32>
    %c0_15 = arith.constant 0 : index
    %c0_16 = arith.constant 0 : index
    %26 = vector.load %arg10[%c0_15, %c0_16] : memref<16x128xf32, #tpu.memory_space<vmem>>, vector<16x128xf32>
    tpu.vector_store %arg10[%c0_15, %c0_16], %25 {strides = array<i32>} : memref<16x128xf32, #tpu.memory_space<vmem>>, vector<16x128xf32>,
    %c0_i32 = arith.constant 0 : i32
    %27 = arith.cmpi eq, %arg0, %c0_i32 : i32
    %28 = arith.extui %27 : i1 to i32
    %c0_i32_17 = arith.constant 0 : i32
    %29 = arith.cmpi ne, %28, %c0_i32_17 : i32
    scf.if %29 {
      %c0_20 = arith.constant 0 : index
      %c0_21 = arith.constant 0 : index
      %33 = vector.load %arg2[%c0_20, %c0_21] : memref<128x128xf32, #tpu.memory_space<vmem>>, vector<128x128xf32>
      %c0_22 = arith.constant 0 : index
      %c0_23 = arith.constant 0 : index
      %34 = vector.load %arg3[%c0_22, %c0_23] : memref<128x128xf32, #tpu.memory_space<vmem>>, vector<128x128xf32>
      %cst_24 = arith.constant 0.000000e+00 : f32
      %35 = vector.broadcast %cst_24 : f32 to vector<128x128xf32>
      %36 = arith.maximumf %34, %35 : vector<128x128xf32>
      %37 = math.absf %34 : vector<128x128xf32>
      %cst_25 = arith.constant 0.000000e+00 : f32
      %38 = vector.broadcast %cst_25 : f32 to vector<128x128xf32>
      %39 = arith.subf %38, %37 : vector<128x128xf32>
      %40 = math.exp %39 : vector<128x128xf32>
      %cst_26 = arith.constant 1.000000e+00 : f32
      %41 = vector.broadcast %cst_26 : f32 to vector<128x128xf32>
      %42 = arith.addf %41, %40 : vector<128x128xf32>
      %43 = math.log %42 : vector<128x128xf32>
      %44 = arith.addf %36, %43 : vector<128x128xf32>
      %45 = math.log %44 : vector<128x128xf32>
      %cst_27 = arith.constant 0.000000e+00 : f32
      %46 = vector.broadcast %cst_27 : f32 to vector<128x128xf32>
      %47 = arith.subf %46, %45 : vector<128x128xf32>
      %48 = arith.mulf %44, %44 : vector<128x128xf32>
      %49 = arith.mulf %33, %33 : vector<128x128xf32>
      %50 = arith.addf %48, %49 : vector<128x128xf32>
      %cst_28 = arith.constant 5.000000e-01 : f32
      %51 = vector.broadcast %cst_28 : f32 to vector<128x128xf32>
      %52 = arith.mulf %51, %50 : vector<128x128xf32>
      %53 = arith.addf %47, %52 : vector<128x128xf32>
      %cst_29 = arith.constant 5.000000e-01 : f32
      %54 = vector.broadcast %cst_29 : f32 to vector<128x128xf32>
      %55 = arith.subf %53, %54 : vector<128x128xf32>
      %56 = tpu.iota {dimensions = array<i32: 0>} : vector<128x128xi32>
      %c32_i32 = arith.constant 32 : i32
      %57 = vector.broadcast %c32_i32 : i32 to vector<128x128xi32>
      %58 = arith.cmpi slt, %56, %57 : vector<128x128xi32>
      %59 = tpu.iota {dimensions = array<i32: 1>} : vector<128x128xi32>
      %c64_i32 = arith.constant 64 : i32
      %60 = vector.broadcast %c64_i32 : i32 to vector<128x128xi32>
      %61 = arith.cmpi slt, %59, %60 : vector<128x128xi32>
      %62 = arith.andi %58, %61 : vector<128x128xi1>
      %cst_30 = arith.constant 0.000000e+00 : f32
      %63 = vector.broadcast %cst_30 : f32 to vector<128x128xf32>
      %64 = arith.select %62, %55, %63 : vector<128x128xi1>, vector<128x128xf32>
      %65 = vector.shape_cast %64 : vector<128x128xf32> to vector<1x128x128xf32>
      %cst_31 = arith.constant dense<0.000000e+00> : vector<1xf32>
      %66 = vector.multi_reduction <add>, %65, %cst_31 [1, 2] : vector<1x128x128xf32> to vector<1xf32>
      %67 = vector.shape_cast %66 : vector<1xf32> to vector<1x1x1xf32>
      %68 = vector.extract %67[0, 0, 0] : f32 from vector<1x1x1xf32>
      %cst_32 = arith.constant 0.000000e+00 : f32
      %69 = arith.addf %cst_32, %68 : f32
      %c0_33 = arith.constant 0 : index
      %c0_34 = arith.constant 0 : index
      %70 = vector.load %arg8[%c0_33, %c0_34] : memref<1x384xf32, #tpu.memory_space<vmem>>, vector<1x128xf32>
      %c0_35 = arith.constant 0 : index
      %c0_36 = arith.constant 0 : index
      %71 = vector.load %arg9[%c0_35, %c0_36] : memref<1x384xf32, #tpu.memory_space<vmem>>, vector<1x128xf32>
      %cst_37 = arith.constant 0.000000e+00 : f32
      %72 = vector.broadcast %cst_37 : f32 to vector<1x128xf32>
      %73 = arith.maximumf %71, %72 : vector<1x128xf32>
      %74 = math.absf %71 : vector<1x128xf32>
      %cst_38 = arith.constant 0.000000e+00 : f32
      %75 = vector.broadcast %cst_38 : f32 to vector<1x128xf32>
      %76 = arith.subf %75, %74 : vector<1x128xf32>
      %77 = math.exp %76 : vector<1x128xf32>
      %cst_39 = arith.constant 1.000000e+00 : f32
      %78 = vector.broadcast %cst_39 : f32 to vector<1x128xf32>
      %79 = arith.addf %78, %77 : vector<1x128xf32>
      %80 = math.log %79 : vector<1x128xf32>
      %81 = arith.addf %73, %80 : vector<1x128xf32>
      %82 = math.log %81 : vector<1x128xf32>
      %cst_40 = arith.constant 0.000000e+00 : f32
      %83 = vector.broadcast %cst_40 : f32 to vector<1x128xf32>
      %84 = arith.subf %83, %82 : vector<1x128xf32>
      %85 = arith.mulf %81, %81 : vector<1x128xf32>
      %86 = arith.mulf %70, %70 : vector<1x128xf32>
      %87 = arith.addf %85, %86 : vector<1x128xf32>
      %cst_41 = arith.constant 5.000000e-01 : f32
      %88 = vector.broadcast %cst_41 : f32 to vector<1x128xf32>
      %89 = arith.mulf %88, %87 : vector<1x128xf32>
      %90 = arith.addf %84, %89 : vector<1x128xf32>
      %cst_42 = arith.constant 5.000000e-01 : f32
      %91 = vector.broadcast %cst_42 : f32 to vector<1x128xf32>
      %92 = arith.subf %90, %91 : vector<1x128xf32>
      %93 = tpu.iota {dimensions = array<i32: 0>} : vector<1x128xi32>
      %c1_i32 = arith.constant 1 : i32
      %94 = vector.broadcast %c1_i32 : i32 to vector<1x128xi32>
      %95 = arith.cmpi slt, %93, %94 : vector<1x128xi32>
      %96 = tpu.iota {dimensions = array<i32: 1>} : vector<1x128xi32>
      %c64_i32_43 = arith.constant 64 : i32
      %97 = vector.broadcast %c64_i32_43 : i32 to vector<1x128xi32>
      %98 = arith.cmpi slt, %96, %97 : vector<1x128xi32>
      %99 = arith.andi %95, %98 : vector<1x128xi1>
      %cst_44 = arith.constant 0.000000e+00 : f32
      %100 = vector.broadcast %cst_44 : f32 to vector<1x128xf32>
      %101 = arith.select %99, %92, %100 : vector<1x128xi1>, vector<1x128xf32>
      %102 = vector.shape_cast %101 : vector<1x128xf32> to vector<1x1x128xf32>
      %cst_45 = arith.constant dense<0.000000e+00> : vector<1xf32>
      %103 = vector.multi_reduction <add>, %102, %cst_45 [1, 2] : vector<1x1x128xf32> to vector<1xf32>
      %104 = vector.shape_cast %103 : vector<1xf32> to vector<1x1x1xf32>
      %105 = vector.extract %104[0, 0, 0] : f32 from vector<1x1x1xf32>
      %106 = arith.addf %69, %105 : f32
      %c0_46 = arith.constant 0 : index
      %c0_47 = arith.constant 0 : index
      %107 = vector.load %arg4[%c0_46, %c0_47] : memref<128x128xf32, #tpu.memory_space<vmem>>, vector<128x128xf32>
      %c0_48 = arith.constant 0 : index
      %c0_49 = arith.constant 0 : index
      %108 = vector.load %arg5[%c0_48, %c0_49] : memref<128x128xf32, #tpu.memory_space<vmem>>, vector<128x128xf32>
      %cst_50 = arith.constant 0.000000e+00 : f32
      %109 = vector.broadcast %cst_50 : f32 to vector<128x128xf32>
      %110 = arith.maximumf %108, %109 : vector<128x128xf32>
      %111 = math.absf %108 : vector<128x128xf32>
      %cst_51 = arith.constant 0.000000e+00 : f32
      %112 = vector.broadcast %cst_51 : f32 to vector<128x128xf32>
      %113 = arith.subf %112, %111 : vector<128x128xf32>
      %114 = math.exp %113 : vector<128x128xf32>
      %cst_52 = arith.constant 1.000000e+00 : f32
      %115 = vector.broadcast %cst_52 : f32 to vector<128x128xf32>
      %116 = arith.addf %115, %114 : vector<128x128xf32>
      %117 = math.log %116 : vector<128x128xf32>
      %118 = arith.addf %110, %117 : vector<128x128xf32>
      %119 = math.log %118 : vector<128x128xf32>
      %cst_53 = arith.constant 0.000000e+00 : f32
      %120 = vector.broadcast %cst_53 : f32 to vector<128x128xf32>
      %121 = arith.subf %120, %119 : vector<128x128xf32>
      %122 = arith.mulf %118, %118 : vector<128x128xf32>
      %123 = arith.mulf %107, %107 : vector<128x128xf32>
      %124 = arith.addf %122, %123 : vector<128x128xf32>
      %cst_54 = arith.constant 5.000000e-01 : f32
      %125 = vector.broadcast %cst_54 : f32 to vector<128x128xf32>
      %126 = arith.mulf %125, %124 : vector<128x128xf32>
      %127 = arith.addf %121, %126 : vector<128x128xf32>
      %cst_55 = arith.constant 5.000000e-01 : f32
      %128 = vector.broadcast %cst_55 : f32 to vector<128x128xf32>
      %129 = arith.subf %127, %128 : vector<128x128xf32>
      %130 = tpu.iota {dimensions = array<i32: 0>} : vector<128x128xi32>
      %c64_i32_56 = arith.constant 64 : i32
      %131 = vector.broadcast %c64_i32_56 : i32 to vector<128x128xi32>
      %132 = arith.cmpi slt, %130, %131 : vector<128x128xi32>
      %133 = tpu.iota {dimensions = array<i32: 1>} : vector<128x128xi32>
      %c32_i32_57 = arith.constant 32 : i32
      %134 = vector.broadcast %c32_i32_57 : i32 to vector<128x128xi32>
      %135 = arith.cmpi slt, %133, %134 : vector<128x128xi32>
      %136 = arith.andi %132, %135 : vector<128x128xi1>
      %cst_58 = arith.constant 0.000000e+00 : f32
      %137 = vector.broadcast %cst_58 : f32 to vector<128x128xf32>
      %138 = arith.select %136, %129, %137 : vector<128x128xi1>, vector<128x128xf32>
      %139 = vector.shape_cast %138 : vector<128x128xf32> to vector<1x128x128xf32>
      %cst_59 = arith.constant dense<0.000000e+00> : vector<1xf32>
      %140 = vector.multi_reduction <add>, %139, %cst_59 [1, 2] : vector<1x128x128xf32> to vector<1xf32>
      %141 = vector.shape_cast %140 : vector<1xf32> to vector<1x1x1xf32>
      %142 = vector.extract %141[0, 0, 0] : f32 from vector<1x1x1xf32>
      %143 = arith.addf %106, %142 : f32
      %c0_60 = arith.constant 0 : index
      %c128_61 = arith.constant 128 : index
      %144 = vector.load %arg8[%c0_60, %c128_61] : memref<1x384xf32, #tpu.memory_space<vmem>>, vector<1x128xf32>
      %c0_62 = arith.constant 0 : index
      %c128_63 = arith.constant 128 : index
      %145 = vector.load %arg9[%c0_62, %c128_63] : memref<1x384xf32, #tpu.memory_space<vmem>>, vector<1x128xf32>
      %cst_64 = arith.constant 0.000000e+00 : f32
      %146 = vector.broadcast %cst_64 : f32 to vector<1x128xf32>
      %147 = arith.maximumf %145, %146 : vector<1x128xf32>
      %148 = math.absf %145 : vector<1x128xf32>
      %cst_65 = arith.constant 0.000000e+00 : f32
      %149 = vector.broadcast %cst_65 : f32 to vector<1x128xf32>
      %150 = arith.subf %149, %148 : vector<1x128xf32>
      %151 = math.exp %150 : vector<1x128xf32>
      %cst_66 = arith.constant 1.000000e+00 : f32
      %152 = vector.broadcast %cst_66 : f32 to vector<1x128xf32>
      %153 = arith.addf %152, %151 : vector<1x128xf32>
      %154 = math.log %153 : vector<1x128xf32>
      %155 = arith.addf %147, %154 : vector<1x128xf32>
      %156 = math.log %155 : vector<1x128xf32>
      %cst_67 = arith.constant 0.000000e+00 : f32
      %157 = vector.broadcast %cst_67 : f32 to vector<1x128xf32>
      %158 = arith.subf %157, %156 : vector<1x128xf32>
      %159 = arith.mulf %155, %155 : vector<1x128xf32>
      %160 = arith.mulf %144, %144 : vector<1x128xf32>
      %161 = arith.addf %159, %160 : vector<1x128xf32>
      %cst_68 = arith.constant 5.000000e-01 : f32
      %162 = vector.broadcast %cst_68 : f32 to vector<1x128xf32>
      %163 = arith.mulf %162, %161 : vector<1x128xf32>
      %164 = arith.addf %158, %163 : vector<1x128xf32>
      %cst_69 = arith.constant 5.000000e-01 : f32
      %165 = vector.broadcast %cst_69 : f32 to vector<1x128xf32>
      %166 = arith.subf %164, %165 : vector<1x128xf32>
      %167 = tpu.iota {dimensions = array<i32: 0>} : vector<1x128xi32>
      %c1_i32_70 = arith.constant 1 : i32
      %168 = vector.broadcast %c1_i32_70 : i32 to vector<1x128xi32>
      %169 = arith.cmpi slt, %167, %168 : vector<1x128xi32>
      %170 = tpu.iota {dimensions = array<i32: 1>} : vector<1x128xi32>
      %c32_i32_71 = arith.constant 32 : i32
      %171 = vector.broadcast %c32_i32_71 : i32 to vector<1x128xi32>
      %172 = arith.cmpi slt, %170, %171 : vector<1x128xi32>
      %173 = arith.andi %169, %172 : vector<1x128xi1>
      %cst_72 = arith.constant 0.000000e+00 : f32
      %174 = vector.broadcast %cst_72 : f32 to vector<1x128xf32>
      %175 = arith.select %173, %166, %174 : vector<1x128xi1>, vector<1x128xf32>
      %176 = vector.shape_cast %175 : vector<1x128xf32> to vector<1x1x128xf32>
      %cst_73 = arith.constant dense<0.000000e+00> : vector<1xf32>
      %177 = vector.multi_reduction <add>, %176, %cst_73 [1, 2] : vector<1x1x128xf32> to vector<1xf32>
      %178 = vector.shape_cast %177 : vector<1xf32> to vector<1x1x1xf32>
      %179 = vector.extract %178[0, 0, 0] : f32 from vector<1x1x1xf32>
      %180 = arith.addf %143, %179 : f32
      %c0_74 = arith.constant 0 : index
      %c0_75 = arith.constant 0 : index
      %181 = vector.load %arg6[%c0_74, %c0_75] : memref<128x128xf32, #tpu.memory_space<vmem>>, vector<128x128xf32>
      %c0_76 = arith.constant 0 : index
      %c0_77 = arith.constant 0 : index
      %182 = vector.load %arg7[%c0_76, %c0_77] : memref<128x128xf32, #tpu.memory_space<vmem>>, vector<128x128xf32>
      %cst_78 = arith.constant 0.000000e+00 : f32
      %183 = vector.broadcast %cst_78 : f32 to vector<128x128xf32>
      %184 = arith.maximumf %182, %183 : vector<128x128xf32>
      %185 = math.absf %182 : vector<128x128xf32>
      %cst_79 = arith.constant 0.000000e+00 : f32
      %186 = vector.broadcast %cst_79 : f32 to vector<128x128xf32>
      %187 = arith.subf %186, %185 : vector<128x128xf32>
      %188 = math.exp %187 : vector<128x128xf32>
      %cst_80 = arith.constant 1.000000e+00 : f32
      %189 = vector.broadcast %cst_80 : f32 to vector<128x128xf32>
      %190 = arith.addf %189, %188 : vector<128x128xf32>
      %191 = math.log %190 : vector<128x128xf32>
      %192 = arith.addf %184, %191 : vector<128x128xf32>
      %193 = math.log %192 : vector<128x128xf32>
      %cst_81 = arith.constant 0.000000e+00 : f32
      %194 = vector.broadcast %cst_81 : f32 to vector<128x128xf32>
      %195 = arith.subf %194, %193 : vector<128x128xf32>
      %196 = arith.mulf %192, %192 : vector<128x128xf32>
      %197 = arith.mulf %181, %181 : vector<128x128xf32>
      %198 = arith.addf %196, %197 : vector<128x128xf32>
      %cst_82 = arith.constant 5.000000e-01 : f32
      %199 = vector.broadcast %cst_82 : f32 to vector<128x128xf32>
      %200 = arith.mulf %199, %198 : vector<128x128xf32>
      %201 = arith.addf %195, %200 : vector<128x128xf32>
      %cst_83 = arith.constant 5.000000e-01 : f32
      %202 = vector.broadcast %cst_83 : f32 to vector<128x128xf32>
      %203 = arith.subf %201, %202 : vector<128x128xf32>
      %204 = tpu.iota {dimensions = array<i32: 0>} : vector<128x128xi32>
      %c32_i32_84 = arith.constant 32 : i32
      %205 = vector.broadcast %c32_i32_84 : i32 to vector<128x128xi32>
      %206 = arith.cmpi slt, %204, %205 : vector<128x128xi32>
      %207 = tpu.iota {dimensions = array<i32: 1>} : vector<128x128xi32>
      %c8_i32 = arith.constant 8 : i32
      %208 = vector.broadcast %c8_i32 : i32 to vector<128x128xi32>
      %209 = arith.cmpi slt, %207, %208 : vector<128x128xi32>
      %210 = arith.andi %206, %209 : vector<128x128xi1>
      %cst_85 = arith.constant 0.000000e+00 : f32
      %211 = vector.broadcast %cst_85 : f32 to vector<128x128xf32>
      %212 = arith.select %210, %203, %211 : vector<128x128xi1>, vector<128x128xf32>
      %213 = vector.shape_cast %212 : vector<128x128xf32> to vector<1x128x128xf32>
      %cst_86 = arith.constant dense<0.000000e+00> : vector<1xf32>
      %214 = vector.multi_reduction <add>, %213, %cst_86 [1, 2] : vector<1x128x128xf32> to vector<1xf32>
      %215 = vector.shape_cast %214 : vector<1xf32> to vector<1x1x1xf32>
      %216 = vector.extract %215[0, 0, 0] : f32 from vector<1x1x1xf32>
      %217 = arith.addf %180, %216 : f32
      %c0_87 = arith.constant 0 : index
      %c256_88 = arith.constant 256 : index
      %218 = vector.load %arg8[%c0_87, %c256_88] : memref<1x384xf32, #tpu.memory_space<vmem>>, vector<1x128xf32>
      %c0_89 = arith.constant 0 : index
      %c256_90 = arith.constant 256 : index
      %219 = vector.load %arg9[%c0_89, %c256_90] : memref<1x384xf32, #tpu.memory_space<vmem>>, vector<1x128xf32>
      %cst_91 = arith.constant 0.000000e+00 : f32
      %220 = vector.broadcast %cst_91 : f32 to vector<1x128xf32>
      %221 = arith.maximumf %219, %220 : vector<1x128xf32>
      %222 = math.absf %219 : vector<1x128xf32>
      %cst_92 = arith.constant 0.000000e+00 : f32
      %223 = vector.broadcast %cst_92 : f32 to vector<1x128xf32>
      %224 = arith.subf %223, %222 : vector<1x128xf32>
      %225 = math.exp %224 : vector<1x128xf32>
      %cst_93 = arith.constant 1.000000e+00 : f32
      %226 = vector.broadcast %cst_93 : f32 to vector<1x128xf32>
      %227 = arith.addf %226, %225 : vector<1x128xf32>
      %228 = math.log %227 : vector<1x128xf32>
      %229 = arith.addf %221, %228 : vector<1x128xf32>
      %230 = math.log %229 : vector<1x128xf32>
      %cst_94 = arith.constant 0.000000e+00 : f32
      %231 = vector.broadcast %cst_94 : f32 to vector<1x128xf32>
      %232 = arith.subf %231, %230 : vector<1x128xf32>
      %233 = arith.mulf %229, %229 : vector<1x128xf32>
      %234 = arith.mulf %218, %218 : vector<1x128xf32>
      %235 = arith.addf %233, %234 : vector<1x128xf32>
      %cst_95 = arith.constant 5.000000e-01 : f32
      %236 = vector.broadcast %cst_95 : f32 to vector<1x128xf32>
      %237 = arith.mulf %236, %235 : vector<1x128xf32>
      %238 = arith.addf %232, %237 : vector<1x128xf32>
      %cst_96 = arith.constant 5.000000e-01 : f32
      %239 = vector.broadcast %cst_96 : f32 to vector<1x128xf32>
      %240 = arith.subf %238, %239 : vector<1x128xf32>
      %241 = tpu.iota {dimensions = array<i32: 0>} : vector<1x128xi32>
      %c1_i32_97 = arith.constant 1 : i32
      %242 = vector.broadcast %c1_i32_97 : i32 to vector<1x128xi32>
      %243 = arith.cmpi slt, %241, %242 : vector<1x128xi32>
      %244 = tpu.iota {dimensions = array<i32: 1>} : vector<1x128xi32>
      %c8_i32_98 = arith.constant 8 : i32
      %245 = vector.broadcast %c8_i32_98 : i32 to vector<1x128xi32>
      %246 = arith.cmpi slt, %244, %245 : vector<1x128xi32>
      %247 = arith.andi %243, %246 : vector<1x128xi1>
      %cst_99 = arith.constant 0.000000e+00 : f32
      %248 = vector.broadcast %cst_99 : f32 to vector<1x128xf32>
      %249 = arith.select %247, %240, %248 : vector<1x128xi1>, vector<1x128xf32>
      %250 = vector.shape_cast %249 : vector<1x128xf32> to vector<1x1x128xf32>
      %cst_100 = arith.constant dense<0.000000e+00> : vector<1xf32>
      %251 = vector.multi_reduction <add>, %250, %cst_100 [1, 2] : vector<1x1x128xf32> to vector<1xf32>
      %252 = vector.shape_cast %251 : vector<1xf32> to vector<1x1x1xf32>
      %253 = vector.extract %252[0, 0, 0] : f32 from vector<1x1x1xf32>
      %254 = arith.addf %217, %253 : f32
      %cst_101 = arith.constant 0.000000e+00 : f32
      %255 = vector.broadcast %cst_101 : f32 to vector<8x128xf32>
      %256 = vector.broadcast %254 : f32 to vector<8x128xf32>
      %257 = arith.addf %255, %256 : vector<8x128xf32>
      %c0_102 = arith.constant 0 : index
      %c0_103 = arith.constant 0 : index
      %258 = vector.load %arg11[%c0_102, %c0_103] : memref<8x128xf32, #tpu.memory_space<vmem>>, vector<8x128xf32>
      tpu.vector_store %arg11[%c0_102, %c0_103], %257 {strides = array<i32>} : memref<8x128xf32, #tpu.memory_space<vmem>>, vector<8x128xf32>,
    } else {
    }
    %c0_i32_18 = arith.constant 0 : i32
    %30 = arith.cmpi ne, %arg0, %c0_i32_18 : i32
    %31 = arith.extui %30 : i1 to i32
    %c0_i32_19 = arith.constant 0 : i32
    %32 = arith.cmpi ne, %31, %c0_i32_19 : i32
    scf.if %32 {
      %cst_20 = arith.constant 0.000000e+00 : f32
      %33 = vector.broadcast %cst_20 : f32 to vector<8x128xf32>
      %c0_21 = arith.constant 0 : index
      %c0_22 = arith.constant 0 : index
      %34 = vector.load %arg11[%c0_21, %c0_22] : memref<8x128xf32, #tpu.memory_space<vmem>>, vector<8x128xf32>
      tpu.vector_store %arg11[%c0_21, %c0_22], %33 {strides = array<i32>} : memref<8x128xf32, #tpu.memory_space<vmem>>, vector<8x128xf32>,
    } else {
    }
    return
  }
  func.func @transform_0(%arg0: i32) -> (i32, i32) {
    %c0_i32 = arith.constant 0 : i32
    %c0_i32_0 = arith.constant 0 : i32
    return %arg0, %c0_i32 : i32, i32
  }
  func.func @transform_1(%arg0: i32) -> (i32, i32) {
    %c0_i32 = arith.constant 0 : i32
    %c0_i32_0 = arith.constant 0 : i32
    %c0_i32_1 = arith.constant 0 : i32
    return %c0_i32, %c0_i32_0 : i32, i32
  }
  func.func @transform_2(%arg0: i32) -> (i32, i32) {
    %c0_i32 = arith.constant 0 : i32
    %c0_i32_0 = arith.constant 0 : i32
    %c0_i32_1 = arith.constant 0 : i32
    return %c0_i32, %c0_i32_0 : i32, i32
  }
  func.func @transform_3(%arg0: i32) -> (i32, i32) {
    %c0_i32 = arith.constant 0 : i32
    %c0_i32_0 = arith.constant 0 : i32
    %c0_i32_1 = arith.constant 0 : i32
    return %c0_i32, %c0_i32_0 : i32, i32
  }
  func.func @transform_4(%arg0: i32) -> (i32, i32) {
    %c0_i32 = arith.constant 0 : i32
    %c0_i32_0 = arith.constant 0 : i32
    %c0_i32_1 = arith.constant 0 : i32
    return %c0_i32, %c0_i32_0 : i32, i32
  }
  func.func @transform_5(%arg0: i32) -> (i32, i32) {
    %c0_i32 = arith.constant 0 : i32
    %c0_i32_0 = arith.constant 0 : i32
    %c0_i32_1 = arith.constant 0 : i32
    return %c0_i32, %c0_i32_0 : i32, i32
  }
  func.func @transform_6(%arg0: i32) -> (i32, i32) {
    %c0_i32 = arith.constant 0 : i32
    %c0_i32_0 = arith.constant 0 : i32
    %c0_i32_1 = arith.constant 0 : i32
    return %c0_i32, %c0_i32_0 : i32, i32
  }
  func.func @transform_7(%arg0: i32) -> (i32, i32) {
    %c0_i32 = arith.constant 0 : i32
    %c0_i32_0 = arith.constant 0 : i32
    %c0_i32_1 = arith.constant 0 : i32
    return %c0_i32, %c0_i32_0 : i32, i32
  }
  func.func @transform_8(%arg0: i32) -> (i32, i32) {
    %c0_i32 = arith.constant 0 : i32
    %c0_i32_0 = arith.constant 0 : i32
    %c0_i32_1 = arith.constant 0 : i32
    return %c0_i32, %c0_i32_0 : i32, i32
  }
  func.func @transform_9(%arg0: i32) -> (i32, i32) {
    %c0_i32 = arith.constant 0 : i32
    %c0_i32_0 = arith.constant 0 : i32
    return %arg0, %c0_i32 : i32, i32
  }
  func.func @transform_10(%arg0: i32) -> (i32, i32) {
    %c0_i32 = arith.constant 0 : i32
    %c0_i32_0 = arith.constant 0 : i32
    return %arg0, %c0_i32 : i32, i32
  }
}

</mosaic_0001>

<llo_original>
// kernel: _lambda_.1
$region0: #{_lambda_.1}
  #allocation0 [shape = 'u32[]', space=smem, size = 0x4, offset = 0x4, fixed_abs, tag = 'smem constant byte address 0x4 - core index']
  #allocation1 [shape = 'u32[72,128]{1,0:T(1,128)}', space=vmem, size = 0x9000, scoped, tag = 'internal scratch']
  %s0 = inlined_call_operand.vmem [shape: f32[48,128], index: 0, kind: input, shape index: {}]
  %s1 = inlined_call_operand.vmem [shape: f32[128,128], index: 1, kind: input, shape index: {}]
  %s2 = inlined_call_operand.vmem [shape: f32[128,128], index: 2, kind: input, shape index: {}]
  %s3 = inlined_call_operand.hbm [shape: f32[128,128], index: 3, kind: input, shape index: {}]
  %s4 = inlined_call_operand.hbm [shape: f32[128,128], index: 4, kind: input, shape index: {}]
  %s5 = inlined_call_operand.hbm [shape: f32[128,128], index: 5, kind: input, shape index: {}]
  %s6 = inlined_call_operand.hbm [shape: f32[128,128], index: 6, kind: input, shape index: {}]
  %s7 = inlined_call_operand.vmem [shape: f32[1,384], index: 7, kind: input, shape index: {}]
  %s8 = inlined_call_operand.vmem [shape: f32[1,384], index: 8, kind: input, shape index: {}]
  %s9 = inlined_call_operand.vmem [shape: f32[48,128], index: 9, kind: output, shape index: {0}]
  %s10 = inlined_call_operand.vmem [shape: f32[24,128], index: 10, kind: output, shape index: {1}]
  %11 = xla_tuple %s9, %s10
  %s12 = sld [smem:[#allocation0]]
  $region101: #{_lambda_.1} parent=0
    _
  %s14 = ssub.s32 1, %s12
  %s15 = scalar_select 0, %s14, %s12
  $region1: #{_lambda_.1} parent=0
    #allocation2 [shape = 'u8[65536]{0}', space=vmem, size = 0x10000, scoped, tag = 'input window, operand 3, single buffered']
    #allocation3 [shape = 's32[2]{0}', space=sflag, size = 0x8, scoped, tag = 'scoped memory for _lambda_.1']
    #allocation4 [shape = 'u8[65536]{0}', space=vmem, size = 0x10000, scoped, tag = 'input window, operand 4, single buffered']
    #allocation5 [shape = 's32[1]{0}', space=sflag, size = 0x4, scoped, tag = 'scoped memory for _lambda_.1']
    #allocation6 [shape = 'u8[65536]{0}', space=vmem, size = 0x10000, scoped, tag = 'input window, operand 5, single buffered']
    #allocation7 [shape = 'u8[65536]{0}', space=vmem, size = 0x10000, scoped, tag = 'input window, operand 6, single buffered']
    #allocation8 [shape = 's32[1]{0}', space=sflag, size = 0x4, scoped, tag = 'scoped memory for _lambda_.1']
    %16 = vsyncpa [#allocation3], 0
    %17 = vsyncpa [#allocation5], 0
    %18 = vsyncpa [#allocation8], 0
    loop: start=0, step=1, limit=5
    $region2: #{_lambda_.1} parent=1 // loop_pre_header
      _
    $region3: #{_lambda_.1} parent=1 // loop_header
      %s20 = sphi 0, %s24
      %p21 = scmp.ge.s32.totalorder %s20, 5
      %s30 = sphi 0, %s32
      %s33 = sphi 0, %s30
      %s34 = sphi 0, %s33
      %s50 = sphi 0, %s34
      %s54 = sphi 0, %s54
      %s56 = sphi 0, %s54
      %s57 = sphi 0, %s56
      %s71 = sphi 0, %s57
      %s75 = sphi 0, %s75
      %s77 = sphi 0, %s75
      %s78 = sphi 0, %s77
      %s92 = sphi 0, %s78
      %s96 = sphi 0, %s96
      %s98 = sphi 0, %s96
      %s99 = sphi 0, %s98
      %s113 = sphi 0, %s99
      %s117 = sphi 0, %s117
      %s119 = sphi 0, %s117
      %s120 = sphi 0, %s119
      %s134 = sphi 0, %s120
      %s138 = sphi 0, %s138
      %s140 = sphi 0, %s138
      %s141 = sphi 0, %s140
      %s155 = sphi 0, %s141
      %s159 = sphi 0, %s159
      %s161 = sphi 0, %s159
      %s162 = sphi 0, %s161
      %s176 = sphi 0, %s162
      %s180 = sphi 0, %s180
      %s182 = sphi 0, %s180
      %s183 = sphi 0, %s182
      %s197 = sphi 0, %s183
      %s201 = sphi 0, %s201
      %s203 = sphi 0, %s201
      %s204 = sphi 0, %s203
      %s218 = sphi 0, %s204
      %s224 = sphi 0, %s226
      %s227 = sphi 0, %s224
      %s228 = sphi 0, %s227
      %s244 = sphi 0, %s228
      %s250 = sphi 0, %s252
      %s253 = sphi 0, %s250
      %s254 = sphi 0, %s253
      %s270 = sphi 0, %s254
    $region4: #{_lambda_.1} parent=1 // loop_header_branch
      %23 = sbr.rel (%p21) target = $region8
    $region5: #{_lambda_.1} parent=1 // loop_body
      %s25 = ssub.s32 %s20, 1
      %s26 = ssub.s32 %s20, 2
      %s27 = sadd.s32 %s20, 1
      %s28 = ssub.s32 %s20, %s27
      %p29 = scmp.eq.s32.totalorder %s28, 0
      %s31 = sadd.s32 %s30, 1
      %s32 = scalar_select %p29, %s30, %s31
      %p35 = pneg %p29
      %p36 = scmp.eq.s32.totalorder %s20, 2
      %p37 = por %p35, %p36
      %p38 = scmp.ne.s32.totalorder %s30, %s33
      %p39 = scmp.eq.s32.totalorder %s20, 0
      %p40 = por %p38, %p39
      %p41 = scmp.ne.s32.totalorder %s30, %s33
      %p42 = scmp.eq.s32.totalorder %s25, 2
      %p43 = por %p41, %p42
      %p44 = scmp.ne.s32.totalorder %s33, %s34
      %p45 = scmp.eq.s32.totalorder %s25, 0
      %p46 = por %p44, %p45
      %p47 = scmp.ne.s32.totalorder %s33, %s34
      %p48 = scmp.eq.s32.totalorder %s26, 2
      %p49 = por %p47, %p48
      %p51 = scmp.ne.s32.totalorder %s34, %s50
      %p52 = scmp.eq.s32.totalorder %s26, 0
      %p53 = por %p51, %p52
      %s55 = sadd.s32 %s54, 1
      %p58 = scmp.eq.s32.totalorder %s20, 2
      %p59 = scmp.ne.s32.totalorder %s54, %s56
      %p60 = scmp.eq.s32.totalorder %s20, 0
      %p61 = por %p59, %p60
      %p62 = scmp.ne.s32.totalorder %s54, %s56
      %p63 = scmp.eq.s32.totalorder %s25, 2
      %p64 = por %p62, %p63
      %p65 = scmp.ne.s32.totalorder %s56, %s57
      %p66 = scmp.eq.s32.totalorder %s25, 0
      %p67 = por %p65, %p66
      %p68 = scmp.ne.s32.totalorder %s56, %s57
      %p69 = scmp.eq.s32.totalorder %s26, 2
      %p70 = por %p68, %p69
      %p72 = scmp.ne.s32.totalorder %s57, %s71
      %p73 = scmp.eq.s32.totalorder %s26, 0
      %p74 = por %p72, %p73
      %s76 = sadd.s32 %s75, 1
      %p79 = scmp.eq.s32.totalorder %s20, 2
      %p80 = scmp.ne.s32.totalorder %s75, %s77
      %p81 = scmp.eq.s32.totalorder %s20, 0
      %p82 = por %p80, %p81
      %p83 = scmp.ne.s32.totalorder %s75, %s77
      %p84 = scmp.eq.s32.totalorder %s25, 2
      %p85 = por %p83, %p84
      %p86 = scmp.ne.s32.totalorder %s77, %s78
      %p87 = scmp.eq.s32.totalorder %s25, 0
      %p88 = por %p86, %p87
      %p89 = scmp.ne.s32.totalorder %s77, %s78
      %p90 = scmp.eq.s32.totalorder %s26, 2
      %p91 = por %p89, %p90
      %p93 = scmp.ne.s32.totalorder %s78, %s92
      %p94 = scmp.eq.s32.totalorder %s26, 0
      %p95 = por %p93, %p94
      %s97 = sadd.s32 %s96, 1
      %p100 = scmp.eq.s32.totalorder %s20, 2
      %p101 = scmp.ne.s32.totalorder %s96, %s98
      %p102 = scmp.eq.s32.totalorder %s20, 0
      %p103 = por %p101, %p102
      %p104 = scmp.ne.s32.totalorder %s96, %s98
      %p105 = scmp.eq.s32.totalorder %s25, 2
      %p106 = por %p104, %p105
      %p107 = scmp.ne.s32.totalorder %s98, %s99
      %p108 = scmp.eq.s32.totalorder %s25, 0
      %p109 = por %p107, %p108
      %p110 = scmp.ne.s32.totalorder %s98, %s99
      %p111 = scmp.eq.s32.totalorder %s26, 2
      %p112 = por %p110, %p111
      %p114 = scmp.ne.s32.totalorder %s99, %s113
      %p115 = scmp.eq.s32.totalorder %s26, 0
      %p116 = por %p114, %p115
      %s118 = sadd.s32 %s117, 1
      %p121 = scmp.eq.s32.totalorder %s20, 2
      %p122 = scmp.ne.s32.totalorder %s117, %s119
      %p123 = scmp.eq.s32.totalorder %s20, 0
      %p124 = por %p122, %p123
      %p125 = scmp.ne.s32.totalorder %s117, %s119
      %p126 = scmp.eq.s32.totalorder %s25, 2
      %p127 = por %p125, %p126
      %p128 = scmp.ne.s32.totalorder %s119, %s120
      %p129 = scmp.eq.s32.totalorder %s25, 0
      %p130 = por %p128, %p129
      %p131 = scmp.ne.s32.totalorder %s119, %s120
      %p132 = scmp.eq.s32.totalorder %s26, 2
      %p133 = por %p131, %p132
      %p135 = scmp.ne.s32.totalorder %s120, %s134
      %p136 = scmp.eq.s32.totalorder %s26, 0
      %p137 = por %p135, %p136
      %s139 = sadd.s32 %s138, 1
      %p142 = scmp.eq.s32.totalorder %s20, 2
      %p143 = scmp.ne.s32.totalorder %s138, %s140
      %p144 = scmp.eq.s32.totalorder %s20, 0
      %p145 = por %p143, %p144
      %p146 = scmp.ne.s32.totalorder %s138, %s140
      %p147 = scmp.eq.s32.totalorder %s25, 2
      %p148 = por %p146, %p147
      %p149 = scmp.ne.s32.totalorder %s140, %s141
      %p150 = scmp.eq.s32.totalorder %s25, 0
      %p151 = por %p149, %p150
      %p152 = scmp.ne.s32.totalorder %s140, %s141
      %p153 = scmp.eq.s32.totalorder %s26, 2
      %p154 = por %p152, %p153
      %p156 = scmp.ne.s32.totalorder %s141, %s155
      %p157 = scmp.eq.s32.totalorder %s26, 0
      %p158 = por %p156, %p157
      %s160 = sadd.s32 %s159, 1
      %p163 = scmp.eq.s32.totalorder %s20, 2
      %p164 = scmp.ne.s32.totalorder %s159, %s161
      %p165 = scmp.eq.s32.totalorder %s20, 0
      %p166 = por %p164, %p165
      %p167 = scmp.ne.s32.totalorder %s159, %s161
      %p168 = scmp.eq.s32.totalorder %s25, 2
      %p169 = por %p167, %p168
      %p170 = scmp.ne.s32.totalorder %s161, %s162
      %p171 = scmp.eq.s32.totalorder %s25, 0
      %p172 = por %p170, %p171
      %p173 = scmp.ne.s32.totalorder %s161, %s162
      %p174 = scmp.eq.s32.totalorder %s26, 2
      %p175 = por %p173, %p174
      %p177 = scmp.ne.s32.totalorder %s162, %s176
      %p178 = scmp.eq.s32.totalorder %s26, 0
      %p179 = por %p177, %p178
      %s181 = sadd.s32 %s180, 1
      %p184 = scmp.eq.s32.totalorder %s20, 2
      %p185 = scmp.ne.s32.totalorder %s180, %s182
      %p186 = scmp.eq.s32.totalorder %s20, 0
      %p187 = por %p185, %p186
      %p188 = scmp.ne.s32.totalorder %s180, %s182
      %p189 = scmp.eq.s32.totalorder %s25, 2
      %p190 = por %p188, %p189
      %p191 = scmp.ne.s32.totalorder %s182, %s183
      %p192 = scmp.eq.s32.totalorder %s25, 0
      %p193 = por %p191, %p192
      %p194 = scmp.ne.s32.totalorder %s182, %s183
      %p195 = scmp.eq.s32.totalorder %s26, 2
      %p196 = por %p194, %p195
      %p198 = scmp.ne.s32.totalorder %s183, %s197
      %p199 = scmp.eq.s32.totalorder %s26, 0
      %p200 = por %p198, %p199
      %s202 = sadd.s32 %s201, 1
      %p205 = scmp.eq.s32.totalorder %s20, 2
      %p206 = scmp.ne.s32.totalorder %s201, %s203
      %p207 = scmp.eq.s32.totalorder %s20, 0
      %p208 = por %p206, %p207
      %p209 = scmp.ne.s32.totalorder %s201, %s203
      %p210 = scmp.eq.s32.totalorder %s25, 2
      %p211 = por %p209, %p210
      %p212 = scmp.ne.s32.totalorder %s203, %s204
      %p213 = scmp.eq.s32.totalorder %s25, 0
      %p214 = por %p212, %p213
      %p215 = scmp.ne.s32.totalorder %s203, %s204
      %p216 = scmp.eq.s32.totalorder %s26, 2
      %p217 = por %p215, %p216
      %p219 = scmp.ne.s32.totalorder %s204, %s218
      %p220 = scmp.eq.s32.totalorder %s26, 0
      %p221 = por %p219, %p220
      %s222 = ssub.s32 %s20, %s27
      %p223 = scmp.eq.s32.totalorder %s222, 0
      %s225 = sadd.s32 %s224, 1
      %s226 = scalar_select %p223, %s224, %s225
      %p229 = pneg %p223
      %p230 = scmp.eq.s32.totalorder %s20, 2
      %p231 = por %p229, %p230
      %p232 = scmp.ne.s32.totalorder %s224, %s227
      %p233 = scmp.eq.s32.totalorder %s20, 0
      %p234 = por %p232, %p233
      %p235 = scmp.ne.s32.totalorder %s224, %s227
      %p236 = scmp.eq.s32.totalorder %s25, 2
      %p237 = por %p235, %p236
      %p238 = scmp.ne.s32.totalorder %s227, %s228
      %p239 = scmp.eq.s32.totalorder %s25, 0
      %p240 = por %p238, %p239
      %p241 = scmp.ne.s32.totalorder %s227, %s228
      %p242 = scmp.eq.s32.totalorder %s26, 2
      %p243 = por %p241, %p242
      %p245 = scmp.ne.s32.totalorder %s228, %s244
      %p246 = scmp.eq.s32.totalorder %s26, 0
      %p247 = por %p245, %p246
      %s248 = ssub.s32 %s20, %s27
      %p249 = scmp.eq.s32.totalorder %s248, 0
      %s251 = sadd.s32 %s250, 1
      %s252 = scalar_select %p249, %s250, %s251
      %p255 = pneg %p249
      %p256 = scmp.eq.s32.totalorder %s20, 2
      %p257 = por %p255, %p256
      %p258 = scmp.ne.s32.totalorder %s250, %s253
      %p259 = scmp.eq.s32.totalorder %s20, 0
      %p260 = por %p258, %p259
      %p261 = scmp.ne.s32.totalorder %s250, %s253
      %p262 = scmp.eq.s32.totalorder %s25, 2
      %p263 = por %p261, %p262
      %p264 = scmp.ne.s32.totalorder %s253, %s254
      %p265 = scmp.eq.s32.totalorder %s25, 0
      %p266 = por %p264, %p265
      %p267 = scmp.ne.s32.totalorder %s253, %s254
      %p268 = scmp.eq.s32.totalorder %s26, 2
      %p269 = por %p267, %p268
      %p271 = scmp.ne.s32.totalorder %s254, %s270
      %p272 = scmp.eq.s32.totalorder %s26, 0
      %p273 = por %p271, %p272
      %p274 = scmp.le.s32.totalorder 1, %s20
      %p275 = scmp.lt.s32.totalorder %s20, 4
      %p276 = pnand %p274, %p275
      %p277 = pneg %p276
      // Predicated region
      $region9: #{_lambda_.1} parent=5 // pred_check
        _
      $region10: #{_lambda_.1} parent=5 // pred_check_branch
        %279 = sbr.rel (%p276) target = $region12
      $region11: #{_lambda_.1} parent=5 // pred_region
        %s280 = ssub.s32 %s20, 1
        // Predicated region
        $region13: #{_lambda_.1} parent=11 // pred_check
          %p281 = pneg %p67
        $region14: #{_lambda_.1} parent=11 // pred_check_branch
          %283 = sbr.rel (%p281) target = $region16
        $region15: #{_lambda_.1} parent=11 // pred_region
          _
        $region16: #{_lambda_.1} parent=11 // pred_fallthru
          _
        // Predicated region
        $region17: #{_lambda_.1} parent=11 // pred_check
          %p284 = pneg %p88
        $region18: #{_lambda_.1} parent=11 // pred_check_branch
          %286 = sbr.rel (%p284) target = $region20
        $region19: #{_lambda_.1} parent=11 // pred_region
          _
        $region20: #{_lambda_.1} parent=11 // pred_fallthru
          _
        // Predicated region
        $region21: #{_lambda_.1} parent=11 // pred_check
          %p287 = pneg %p109
        $region22: #{_lambda_.1} parent=11 // pred_check_branch
          %289 = sbr.rel (%p287) target = $region24
        $region23: #{_lambda_.1} parent=11 // pred_region
          %291 = vsyncadd [#allocation3], 0
          %s292 = sshll.u32 %s3, 4
          %s293 = int_to_ptr.hbm [resolvable:$true] %s292
          %s294 = sshll.u32 [#allocation2], 4
          %s295 = int_to_ptr.vmem [resolvable:$true] %s294
          %300 = dma.hbm_to_vmem [thread:$0]  %s293, 2048, %s295, [#allocation3], 128, 128, 8
        $region24: #{_lambda_.1} parent=11 // pred_fallthru
          _
        // Predicated region
        $region25: #{_lambda_.1} parent=11 // pred_check
          %p301 = pneg %p130
        $region26: #{_lambda_.1} parent=11 // pred_check_branch
          %303 = sbr.rel (%p301) target = $region28
        $region27: #{_lambda_.1} parent=11 // pred_region
          %305 = vsyncadd [#allocation5], 0
          %s306 = sshll.u32 %s4, 4
          %s307 = int_to_ptr.hbm [resolvable:$true] %s306
          %s308 = sshll.u32 [#allocation4], 4
          %s309 = int_to_ptr.vmem [resolvable:$true] %s308
          %314 = dma.hbm_to_vmem [thread:$0]  %s307, 2048, %s309, [#allocation5], 128, 128, 8
        $region28: #{_lambda_.1} parent=11 // pred_fallthru
          _
        // Predicated region
        $region29: #{_lambda_.1} parent=11 // pred_check
          %p315 = pneg %p151
        $region30: #{_lambda_.1} parent=11 // pred_check_branch
          %317 = sbr.rel (%p315) target = $region32
        $region31: #{_lambda_.1} parent=11 // pred_region
          %319 = vsyncadd [#allocation5], 0
          %s320 = sshll.u32 %s5, 4
          %s321 = int_to_ptr.hbm [resolvable:$true] %s320
          %s322 = sshll.u32 [#allocation6], 4
          %s323 = int_to_ptr.vmem [resolvable:$true] %s322
          %328 = dma.hbm_to_vmem [thread:$0]  %s321, 2048, %s323, [#allocation5], 128, 128, 8
        $region32: #{_lambda_.1} parent=11 // pred_fallthru
          _
        // Predicated region
        $region33: #{_lambda_.1} parent=11 // pred_check
          %p329 = pneg %p172
        $region34: #{_lambda_.1} parent=11 // pred_check_branch
          %331 = sbr.rel (%p329) target = $region36
        $region35: #{_lambda_.1} parent=11 // pred_region
          %333 = vsyncadd [#allocation8], 0
          %s334 = sshll.u32 %s6, 4
          %s335 = int_to_ptr.hbm [resolvable:$true] %s334
          %s336 = sshll.u32 [#allocation7], 4
          %s337 = int_to_ptr.vmem [resolvable:$true] %s336
          %342 = dma.hbm_to_vmem [thread:$0]  %s335, 2048, %s337, [#allocation8], 128, 128, 8
        $region36: #{_lambda_.1} parent=11 // pred_fallthru
          _
        // Predicated region
        $region37: #{_lambda_.1} parent=11 // pred_check
          %p343 = pneg %p193
        $region38: #{_lambda_.1} parent=11 // pred_check_branch
          %345 = sbr.rel (%p343) target = $region40
        $region39: #{_lambda_.1} parent=11 // pred_region
          _
        $region40: #{_lambda_.1} parent=11 // pred_fallthru
          _
        // Predicated region
        $region41: #{_lambda_.1} parent=11 // pred_check
          %p346 = pneg %p214
        $region42: #{_lambda_.1} parent=11 // pred_check_branch
          %348 = sbr.rel (%p346) target = $region44
        $region43: #{_lambda_.1} parent=11 // pred_region
          _
        $region44: #{_lambda_.1} parent=11 // pred_fallthru
          _
      $region12: #{_lambda_.1} parent=5 // pred_fallthru
        _
      %p349 = scmp.lt.s32.totalorder %s20, 3
      // Predicated region
      $region45: #{_lambda_.1} parent=5 // pred_check
        %p350 = pneg %p349
      $region46: #{_lambda_.1} parent=5 // pred_check_branch
        %352 = sbr.rel (%p350) target = $region48
      $region47: #{_lambda_.1} parent=5 // pred_region
        // Predicated region
        $region49: #{_lambda_.1} parent=47 // pred_check
          %p353 = pneg %p40
        $region50: #{_lambda_.1} parent=47 // pred_check_branch
          %355 = sbr.rel (%p353) target = $region52
        $region51: #{_lambda_.1} parent=47 // pred_region
          %s356 = smul.u32 2, %s20
          %p357 = scmp.lt.s32.totalorder %s356, 5
          %s358 = scalar_select %p357, %s356, 5
          %s359 = smul.addr %s358, 8
          %s360 = scalar_lea.vmem %s0, %s359
          %s361 = smul.u32 2, %s20
        $region52: #{_lambda_.1} parent=47 // pred_fallthru
          _
      $region48: #{_lambda_.1} parent=5 // pred_fallthru
        _
      %p362 = scmp.le.s32.totalorder 1, %s20
      %p363 = scmp.lt.s32.totalorder %s20, 4
      %p364 = pnand %p362, %p363
      %p365 = pneg %p364
      // Predicated region
      $region53: #{_lambda_.1} parent=5 // pred_check
        _
      $region54: #{_lambda_.1} parent=5 // pred_check_branch
        %367 = sbr.rel (%p364) target = $region56
      $region55: #{_lambda_.1} parent=5 // pred_region
        %s368 = ssub.s32 %s20, 1
        // Predicated region
        $region57: #{_lambda_.1} parent=55 // pred_check
          %p369 = pneg %p109
        $region58: #{_lambda_.1} parent=55 // pred_check_branch
          %371 = sbr.rel (%p369) target = $region60
        $region59: #{_lambda_.1} parent=55 // pred_region
          %373 = dma.done [#allocation3], 2048
        $region60: #{_lambda_.1} parent=55 // pred_fallthru
          _
        // Predicated region
        $region61: #{_lambda_.1} parent=55 // pred_check
          %p374 = pneg %p130
        $region62: #{_lambda_.1} parent=55 // pred_check_branch
          %376 = sbr.rel (%p374) target = $region64
        $region63: #{_lambda_.1} parent=55 // pred_region
          %378 = dma.done [#allocation5], 2048
        $region64: #{_lambda_.1} parent=55 // pred_fallthru
          _
        // Predicated region
        $region65: #{_lambda_.1} parent=55 // pred_check
          %p379 = pneg %p151
        $region66: #{_lambda_.1} parent=55 // pred_check_branch
          %381 = sbr.rel (%p379) target = $region68
        $region67: #{_lambda_.1} parent=55 // pred_region
          %383 = dma.done [#allocation5], 2048
        $region68: #{_lambda_.1} parent=55 // pred_fallthru
          _
        // Predicated region
        $region69: #{_lambda_.1} parent=55 // pred_check
          %p384 = pneg %p172
        $region70: #{_lambda_.1} parent=55 // pred_check_branch
          %386 = sbr.rel (%p384) target = $region72
        $region71: #{_lambda_.1} parent=55 // pred_region
          %388 = dma.done [#allocation8], 2048
        $region72: #{_lambda_.1} parent=55 // pred_fallthru
          _
        %s389 = smul.u32 2, %s25
        %p390 = scmp.lt.s32.totalorder %s389, 5
        %s391 = scalar_select %p390, %s389, 5
        %s392 = smul.addr %s391, 8
        %s393 = scalar_lea.vmem %s0, %s392
        %p394 = pneg %p46
        %p395 = pneg %p43
        %p396 = pneg %p67
        %p397 = pneg %p64
        %p398 = pneg %p88
        %p399 = pneg %p85
        %p400 = pneg %p109
        %p401 = pneg %p106
        %p402 = pneg %p130
        %p403 = pneg %p127
        %p404 = pneg %p151
        %p405 = pneg %p148
        %p406 = pneg %p172
        %p407 = pneg %p169
        %p408 = pneg %p193
        %p409 = pneg %p190
        %p410 = pneg %p214
        %p411 = pneg %p211
        %p412 = pneg %p240
        %p413 = pneg %p237
        %s414 = smul.u32 2, %s25
        %p415 = scmp.lt.s32.totalorder %s414, 5
        %s416 = scalar_select %p415, %s414, 5
        %s417 = smul.addr %s416, 8
        %s418 = scalar_lea.vmem %s9, %s417
        %p419 = pneg %p266
        %p420 = pneg %p263
        %p421 = scmp.lt.s32.totalorder %s25, 2
        %s422 = scalar_select %p421, %s25, 2
        %s423 = smul.addr %s422, 8
        %s424 = scalar_lea.vmem %s10, %s423
        %s425 = smul.u32 2, %s25
        %p426 = scmp.lt.s32.totalorder %s425, 5
        %s427 = scalar_select %p426, %s425, 5
        %s428 = smul.addr %s427, 8
        %s429 = scalar_lea.vmem %s0, %s428
        %s430 = smul.u32 2, %s25
        %s431 = smul.u32 2, %s25
        %p432 = scmp.lt.s32.totalorder %s431, 5
        %s433 = scalar_select %p432, %s431, 5
        %s434 = smul.addr %s433, 8
        %s435 = scalar_lea.vmem %s9, %s434
        %s436 = smul.u32 2, %s25
        %p437 = scmp.lt.s32.totalorder %s25, 2
        %s438 = scalar_select %p437, %s25, 2
        %s439 = smul.addr %s438, 8
        %s440 = scalar_lea.vmem %s10, %s439
        %v441 = vld [vmem:[%s429] sm:$0xff]
        %v442 = vld [vmem:[%s429 + $0x8] sm:$0xff]
        %v443 = vld [vmem:[%s1] sm:$0xff]
        %v444 = vld [vmem:[%s1 + $0x8] sm:$0xff]
        %v445 = vld [vmem:[%s1 + $0x10] sm:$0xff]
        %v446 = vld [vmem:[%s1 + $0x18] sm:$0xff]
        %v447 = vld [vmem:[%s1 + $0x20] sm:$0xff]
        %v448 = vld [vmem:[%s1 + $0x28] sm:$0xff]
        %v449 = vld [vmem:[%s1 + $0x30] sm:$0xff]
        %v450 = vld [vmem:[%s1 + $0x38] sm:$0xff]
        %v451 = vld [vmem:[%s1 + $0x40] sm:$0xff]
        %v452 = vld [vmem:[%s1 + $0x48] sm:$0xff]
        %v453 = vld [vmem:[%s1 + $0x50] sm:$0xff]
        %v454 = vld [vmem:[%s1 + $0x58] sm:$0xff]
        %v455 = vld [vmem:[%s1 + $0x60] sm:$0xff]
        %v456 = vld [vmem:[%s1 + $0x68] sm:$0xff]
        %v457 = vld [vmem:[%s1 + $0x70] sm:$0xff]
        %v458 = vld [vmem:[%s1 + $0x78] sm:$0xff]
        %v459 = vld [vmem:[%s7] sm:$0x1]
        %v460 = vpack.c.bf16 %v442, %v441
        %v461 = vpack.c.bf16 %v444, %v443
        %v462 = vpack.c.bf16 %v446, %v445
        %v463 = vpack.c.bf16 %v448, %v447
        %v464 = vpack.c.bf16 %v450, %v449
        %v465 = vpack.c.bf16 %v452, %v451
        %v466 = vpack.c.bf16 %v454, %v453
        %v467 = vpack.c.bf16 %v456, %v455
        %v468 = vpack.c.bf16 %v458, %v457
        %v470 = vperm.slane %v459, 0
        %472 = vmatpush.bf16.msra.mxu0 %v468
        %473 = vmatpush.bf16.msra.mxu0 %v467
        %474 = vmatpush.bf16.msra.mxu0 %v466
        %475 = vmatpush.bf16.msra.mxu0 %v465
        %476 = vmatpush.bf16.msra.mxu0 %v464
        %477 = vmatpush.bf16.msra.mxu0 %v463
        %478 = vmatpush.bf16.msra.mxu0 %v462
        %479 = vmatpush.bf16.msra.mxu0 %v461
        %480 = vmatmul.bf16.gmra.mxu0 %v460
        %v481 = vpop.f32.mrf.mxu0
        %v482 = vadd.f32 %v470, %v481
        %v483 = vpop.f32.mrf.mxu0
        %v484 = vadd.f32 %v470, %v483
        %485 = vdwg.mxu0
        %v486 = vmax.f32 %v482, 0.0
        %v487 = vmax.f32 %v484, 0.0
        %v488 = vld [vmem:[#allocation2] sm:$0xff]
        %v489 = vld [vmem:[#allocation2 + $0x8] sm:$0xff]
        %v490 = vld [vmem:[#allocation2 + $0x10] sm:$0xff]
        %v491 = vld [vmem:[#allocation2 + $0x18] sm:$0xff]
        %v492 = vld [vmem:[#allocation2 + $0x20] sm:$0xff]
        %v493 = vld [vmem:[#allocation2 + $0x28] sm:$0xff]
        %v494 = vld [vmem:[#allocation2 + $0x30] sm:$0xff]
        %v495 = vld [vmem:[#allocation2 + $0x38] sm:$0xff]
        %v496 = vld [vmem:[#allocation2 + $0x40] sm:$0xff]
        %v497 = vld [vmem:[#allocation2 + $0x48] sm:$0xff]
        %v498 = vld [vmem:[#allocation2 + $0x50] sm:$0xff]
        %v499 = vld [vmem:[#allocation2 + $0x58] sm:$0xff]
        %v500 = vld [vmem:[#allocation2 + $0x60] sm:$0xff]
        %v501 = vld [vmem:[#allocation2 + $0x68] sm:$0xff]
        %v502 = vld [vmem:[#allocation2 + $0x70] sm:$0xff]
        %v503 = vld [vmem:[#allocation2 + $0x78] sm:$0xff]
        %v504 = vld [vmem:[%s7 + $0x1] sm:$0x1]
        %v505 = vpack.c.bf16 %v487, %v486
        %v506 = vpack.c.bf16 %v489, %v488
        %v507 = vpack.c.bf16 %v491, %v490
        %v508 = vpack.c.bf16 %v493, %v492
        %v509 = vpack.c.bf16 %v495, %v494
        %v510 = vpack.c.bf16 %v497, %v496
        %v511 = vpack.c.bf16 %v499, %v498
        %v512 = vpack.c.bf16 %v501, %v500
        %v513 = vpack.c.bf16 %v503, %v502
        %v515 = vperm.slane %v504, 0
        %517 = vmatpush.bf16.msra.mxu0 %v513
        %518 = vmatpush.bf16.msra.mxu0 %v512
        %519 = vmatpush.bf16.msra.mxu0 %v511
        %520 = vmatpush.bf16.msra.mxu0 %v510
        %521 = vmatpush.bf16.msra.mxu0 %v509
        %522 = vmatpush.bf16.msra.mxu0 %v508
        %523 = vmatpush.bf16.msra.mxu0 %v507
        %524 = vmatpush.bf16.msra.mxu0 %v506
        %525 = vmatmul.bf16.gmra.mxu0 %v505
        %v526 = vpop.f32.mrf.mxu0
        %v527 = vadd.f32 %v515, %v526
        %v528 = vpop.f32.mrf.mxu0
        %v529 = vadd.f32 %v515, %v528
        %530 = vdwg.mxu0
        %v531 = vmax.f32 %v527, 0.0
        %v532 = vmax.f32 %v529, 0.0
        %v533 = vld [vmem:[#allocation6] sm:$0xff]
        %v534 = vld [vmem:[#allocation6 + $0x8] sm:$0xff]
        %v535 = vld [vmem:[#allocation6 + $0x10] sm:$0xff]
        %v536 = vld [vmem:[#allocation6 + $0x18] sm:$0xff]
        %v537 = vld [vmem:[#allocation6 + $0x20] sm:$0xff]
        %v538 = vld [vmem:[#allocation6 + $0x28] sm:$0xff]
        %v539 = vld [vmem:[#allocation6 + $0x30] sm:$0xff]
        %v540 = vld [vmem:[#allocation6 + $0x38] sm:$0xff]
        %v541 = vld [vmem:[#allocation6 + $0x40] sm:$0xff]
        %v542 = vld [vmem:[#allocation6 + $0x48] sm:$0xff]
        %v543 = vld [vmem:[#allocation6 + $0x50] sm:$0xff]
        %v544 = vld [vmem:[#allocation6 + $0x58] sm:$0xff]
        %v545 = vld [vmem:[#allocation6 + $0x60] sm:$0xff]
        %v546 = vld [vmem:[#allocation6 + $0x68] sm:$0xff]
        %v547 = vld [vmem:[#allocation6 + $0x70] sm:$0xff]
        %v548 = vld [vmem:[#allocation6 + $0x78] sm:$0xff]
        %v549 = vld [vmem:[%s7 + $0x2] sm:$0x1]
        %v550 = vpack.c.bf16 %v532, %v531
        %v551 = vpack.c.bf16 %v534, %v533
        %v552 = vpack.c.bf16 %v536, %v535
        %v553 = vpack.c.bf16 %v538, %v537
        %v554 = vpack.c.bf16 %v540, %v539
        %v555 = vpack.c.bf16 %v542, %v541
        %v556 = vpack.c.bf16 %v544, %v543
        %v557 = vpack.c.bf16 %v546, %v545
        %v558 = vpack.c.bf16 %v548, %v547
        %v560 = vperm.slane %v549, 0
        %562 = vmatpush.bf16.msra.mxu0 %v558
        %563 = vmatpush.bf16.msra.mxu0 %v557
        %564 = vmatpush.bf16.msra.mxu0 %v556
        %565 = vmatpush.bf16.msra.mxu0 %v555
        %566 = vmatpush.bf16.msra.mxu0 %v554
        %567 = vmatpush.bf16.msra.mxu0 %v553
        %568 = vmatpush.bf16.msra.mxu0 %v552
        %569 = vmatpush.bf16.msra.mxu0 %v551
        %570 = vmatmul.bf16.gmra.mxu0 %v550
        %v571 = vpop.f32.mrf.mxu0
        %v572 = vadd.f32 %v560, %v571
        %v573 = vpop.f32.mrf.mxu0
        %v574 = vadd.f32 %v560, %v573
        %575 = vdwg.mxu0
        %576 = vst [vmem:[%s435] sm:$0xff] %v572
        %577 = vst [vmem:[%s435 + $0x8] sm:$0xff] %v574
        %p578 = scmp.eq.s32.totalorder %s25, 0
        // Predicated region
        $region73: #{_lambda_.1} parent=55 // pred_check
          %p579 = pneg %p578
        $region74: #{_lambda_.1} parent=55 // pred_check_branch
          %581 = sbr.rel (%p579) target = $region76
        $region75: #{_lambda_.1} parent=55 // pred_region
          %v582 = vld [vmem:[%s1] sm:$0xff]
          %v583 = vld [vmem:[%s1 + $0x8] sm:$0xff]
          %v584 = vld [vmem:[%s1 + $0x10] sm:$0xff]
          %v585 = vld [vmem:[%s1 + $0x18] sm:$0xff]
          %v586 = vld [vmem:[%s1 + $0x20] sm:$0xff]
          %v587 = vld [vmem:[%s1 + $0x28] sm:$0xff]
          %v588 = vld [vmem:[%s1 + $0x30] sm:$0xff]
          %v589 = vld [vmem:[%s1 + $0x38] sm:$0xff]
          %v590 = vld [vmem:[%s1 + $0x40] sm:$0xff]
          %v591 = vld [vmem:[%s1 + $0x48] sm:$0xff]
          %v592 = vld [vmem:[%s1 + $0x50] sm:$0xff]
          %v593 = vld [vmem:[%s1 + $0x58] sm:$0xff]
          %v594 = vld [vmem:[%s1 + $0x60] sm:$0xff]
          %v595 = vld [vmem:[%s1 + $0x68] sm:$0xff]
          %v596 = vld [vmem:[%s1 + $0x70] sm:$0xff]
          %v597 = vld [vmem:[%s1 + $0x78] sm:$0xff]
          %v598 = vld [vmem:[%s2] sm:$0xff]
          %v599 = vld [vmem:[%s2 + $0x8] sm:$0xff]
          %v600 = vld [vmem:[%s2 + $0x10] sm:$0xff]
          %v601 = vld [vmem:[%s2 + $0x18] sm:$0xff]
          %v602 = vld [vmem:[%s2 + $0x20] sm:$0xff]
          %v603 = vld [vmem:[%s2 + $0x28] sm:$0xff]
          %v604 = vld [vmem:[%s2 + $0x30] sm:$0xff]
          %v605 = vld [vmem:[%s2 + $0x38] sm:$0xff]
          %v606 = vld [vmem:[%s2 + $0x40] sm:$0xff]
          %v607 = vld [vmem:[%s2 + $0x48] sm:$0xff]
          %v608 = vld [vmem:[%s2 + $0x50] sm:$0xff]
          %v609 = vld [vmem:[%s2 + $0x58] sm:$0xff]
          %v610 = vld [vmem:[%s2 + $0x60] sm:$0xff]
          %v611 = vld [vmem:[%s2 + $0x68] sm:$0xff]
          %v612 = vld [vmem:[%s2 + $0x70] sm:$0xff]
          %v613 = vld [vmem:[%s2 + $0x78] sm:$0xff]
          %v614 = vmax.f32 %v598, 0.0
          %v615 = vmax.f32 %v599, 0.0
          %v616 = vmax.f32 %v600, 0.0
          %v617 = vmax.f32 %v601, 0.0
          %v618 = vmax.f32 %v602, 0.0
          %v619 = vmax.f32 %v603, 0.0
          %v620 = vmax.f32 %v604, 0.0
          %v621 = vmax.f32 %v605, 0.0
          %v622 = vmax.f32 %v606, 0.0
          %v623 = vmax.f32 %v607, 0.0
          %v624 = vmax.f32 %v608, 0.0
          %v625 = vmax.f32 %v609, 0.0
          %v626 = vmax.f32 %v610, 0.0
          %v627 = vmax.f32 %v611, 0.0
          %v628 = vmax.f32 %v612, 0.0
          %v629 = vmax.f32 %v613, 0.0
          %v630 = vand.u32 2147483647, %v598
          %v631 = vand.u32 2147483647, %v599
          %v632 = vand.u32 2147483647, %v600
          %v633 = vand.u32 2147483647, %v601
          %v634 = vand.u32 2147483647, %v602
          %v635 = vand.u32 2147483647, %v603
          %v636 = vand.u32 2147483647, %v604
          %v637 = vand.u32 2147483647, %v605
          %v638 = vand.u32 2147483647, %v606
          %v639 = vand.u32 2147483647, %v607
          %v640 = vand.u32 2147483647, %v608
          %v641 = vand.u32 2147483647, %v609
          %v642 = vand.u32 2147483647, %v610
          %v643 = vand.u32 2147483647, %v611
          %v644 = vand.u32 2147483647, %v612
          %v645 = vand.u32 2147483647, %v613
          %v646 = vsub.f32 0.0, %v630
          %v647 = vsub.f32 0.0, %v631
          %v648 = vsub.f32 0.0, %v632
          %v649 = vsub.f32 0.0, %v633
          %v650 = vsub.f32 0.0, %v634
          %v651 = vsub.f32 0.0, %v635
          %v652 = vsub.f32 0.0, %v636
          %v653 = vsub.f32 0.0, %v637
          %v654 = vsub.f32 0.0, %v638
          %v655 = vsub.f32 0.0, %v639
          %v656 = vsub.f32 0.0, %v640
          %v657 = vsub.f32 0.0, %v641
          %v658 = vsub.f32 0.0, %v642
          %v659 = vsub.f32 0.0, %v643
          %v660 = vsub.f32 0.0, %v644
          %v661 = vsub.f32 0.0, %v645
          %v662 = vmul.f32 %v646, 1.442695
          %v663 = vpow.pop %v662
          %v664 = vmul.f32 %v647, 1.442695
          %v665 = vpow.pop %v664
          %v666 = vmul.f32 %v648, 1.442695
          %v667 = vpow.pop %v666
          %v668 = vmul.f32 %v649, 1.442695
          %v669 = vpow.pop %v668
          %v670 = vmul.f32 %v650, 1.442695
          %v671 = vpow.pop %v670
          %v672 = vmul.f32 %v651, 1.442695
          %v673 = vpow.pop %v672
          %v674 = vmul.f32 %v652, 1.442695
          %v675 = vpow.pop %v674
          %v676 = vmul.f32 %v653, 1.442695
          %v677 = vpow.pop %v676
          %v678 = vmul.f32 %v654, 1.442695
          %v679 = vpow.pop %v678
          %v680 = vmul.f32 %v655, 1.442695
          %v681 = vpow.pop %v680
          %v682 = vmul.f32 %v656, 1.442695
          %v683 = vpow.pop %v682
          %v684 = vmul.f32 %v657, 1.442695
          %v685 = vpow.pop %v684
          %v686 = vmul.f32 %v658, 1.442695
          %v687 = vpow.pop %v686
          %v688 = vmul.f32 %v659, 1.442695
          %v689 = vpow.pop %v688
          %v690 = vmul.f32 %v660, 1.442695
          %v691 = vpow.pop %v690
          %v692 = vmul.f32 %v661, 1.442695
          %v693 = vpow.pop %v692
          %v694 = vadd.f32 %v663, 1.0
          %v695 = vadd.f32 %v665, 1.0
          %v696 = vadd.f32 %v667, 1.0
          %v697 = vadd.f32 %v669, 1.0
          %v698 = vadd.f32 %v671, 1.0
          %v699 = vadd.f32 %v673, 1.0
          %v700 = vadd.f32 %v675, 1.0
          %v701 = vadd.f32 %v677, 1.0
          %v702 = vadd.f32 %v679, 1.0
          %v703 = vadd.f32 %v681, 1.0
          %v704 = vadd.f32 %v683, 1.0
          %v705 = vadd.f32 %v685, 1.0
          %v706 = vadd.f32 %v687, 1.0
          %v707 = vadd.f32 %v689, 1.0
          %v708 = vadd.f32 %v691, 1.0
          %v709 = vadd.f32 %v693, 1.0
          %v710 = vlog2.pop %v694
          %v711 = vmul.f32 %v710, 0.6931472
          %v712 = vlog2.pop %v695
          %v713 = vmul.f32 %v712, 0.6931472
          %v714 = vlog2.pop %v696
          %v715 = vmul.f32 %v714, 0.6931472
          %v716 = vlog2.pop %v697
          %v717 = vmul.f32 %v716, 0.6931472
          %v718 = vlog2.pop %v698
          %v719 = vmul.f32 %v718, 0.6931472
          %v720 = vlog2.pop %v699
          %v721 = vmul.f32 %v720, 0.6931472
          %v722 = vlog2.pop %v700
          %v723 = vmul.f32 %v722, 0.6931472
          %v724 = vlog2.pop %v701
          %v725 = vmul.f32 %v724, 0.6931472
          %v726 = vlog2.pop %v702
          %v727 = vmul.f32 %v726, 0.6931472
          %v728 = vlog2.pop %v703
          %v729 = vmul.f32 %v728, 0.6931472
          %v730 = vlog2.pop %v704
          %v731 = vmul.f32 %v730, 0.6931472
          %v732 = vlog2.pop %v705
          %v733 = vmul.f32 %v732, 0.6931472
          %v734 = vlog2.pop %v706
          %v735 = vmul.f32 %v734, 0.6931472
          %v736 = vlog2.pop %v707
          %v737 = vmul.f32 %v736, 0.6931472
          %v738 = vlog2.pop %v708
          %v739 = vmul.f32 %v738, 0.6931472
          %v740 = vlog2.pop %v709
          %v741 = vmul.f32 %v740, 0.6931472
          %v742 = vadd.f32 %v614, %v711
          %v743 = vadd.f32 %v615, %v713
          %v744 = vadd.f32 %v616, %v715
          %v745 = vadd.f32 %v617, %v717
          %v746 = vadd.f32 %v618, %v719
          %v747 = vadd.f32 %v619, %v721
          %v748 = vadd.f32 %v620, %v723
          %v749 = vadd.f32 %v621, %v725
          %v750 = vadd.f32 %v622, %v727
          %v751 = vadd.f32 %v623, %v729
          %v752 = vadd.f32 %v624, %v731
          %v753 = vadd.f32 %v625, %v733
          %v754 = vadd.f32 %v626, %v735
          %v755 = vadd.f32 %v627, %v737
          %v756 = vadd.f32 %v628, %v739
          %v757 = vadd.f32 %v629, %v741
          %v758 = vlog2.pop %v742
          %v759 = vmul.f32 %v758, 0.6931472
          %v760 = vlog2.pop %v743
          %v761 = vmul.f32 %v760, 0.6931472
          %v762 = vlog2.pop %v744
          %v763 = vmul.f32 %v762, 0.6931472
          %v764 = vlog2.pop %v745
          %v765 = vmul.f32 %v764, 0.6931472
          %v766 = vlog2.pop %v746
          %v767 = vmul.f32 %v766, 0.6931472
          %v768 = vlog2.pop %v747
          %v769 = vmul.f32 %v768, 0.6931472
          %v770 = vlog2.pop %v748
          %v771 = vmul.f32 %v770, 0.6931472
          %v772 = vlog2.pop %v749
          %v773 = vmul.f32 %v772, 0.6931472
          %v774 = vlog2.pop %v750
          %v775 = vmul.f32 %v774, 0.6931472
          %v776 = vlog2.pop %v751
          %v777 = vmul.f32 %v776, 0.6931472
          %v778 = vlog2.pop %v752
          %v779 = vmul.f32 %v778, 0.6931472
          %v780 = vlog2.pop %v753
          %v781 = vmul.f32 %v780, 0.6931472
          %v782 = vlog2.pop %v754
          %v783 = vmul.f32 %v782, 0.6931472
          %v784 = vlog2.pop %v755
          %v785 = vmul.f32 %v784, 0.6931472
          %v786 = vlog2.pop %v756
          %v787 = vmul.f32 %v786, 0.6931472
          %v788 = vlog2.pop %v757
          %v789 = vmul.f32 %v788, 0.6931472
          %v790 = vsub.f32 0.0, %v759
          %v791 = vsub.f32 0.0, %v761
          %v792 = vsub.f32 0.0, %v763
          %v793 = vsub.f32 0.0, %v765
          %v794 = vsub.f32 0.0, %v767
          %v795 = vsub.f32 0.0, %v769
          %v796 = vsub.f32 0.0, %v771
          %v797 = vsub.f32 0.0, %v773
          %v798 = vsub.f32 0.0, %v775
          %v799 = vsub.f32 0.0, %v777
          %v800 = vsub.f32 0.0, %v779
          %v801 = vsub.f32 0.0, %v781
          %v802 = vsub.f32 0.0, %v783
          %v803 = vsub.f32 0.0, %v785
          %v804 = vsub.f32 0.0, %v787
          %v805 = vsub.f32 0.0, %v789
          %v806 = vmul.f32 %v742, %v742
          %v807 = vmul.f32 %v743, %v743
          %v808 = vmul.f32 %v744, %v744
          %v809 = vmul.f32 %v745, %v745
          %v810 = vmul.f32 %v746, %v746
          %v811 = vmul.f32 %v747, %v747
          %v812 = vmul.f32 %v748, %v748
          %v813 = vmul.f32 %v749, %v749
          %v814 = vmul.f32 %v750, %v750
          %v815 = vmul.f32 %v751, %v751
          %v816 = vmul.f32 %v752, %v752
          %v817 = vmul.f32 %v753, %v753
          %v818 = vmul.f32 %v754, %v754
          %v819 = vmul.f32 %v755, %v755
          %v820 = vmul.f32 %v756, %v756
          %v821 = vmul.f32 %v757, %v757
          %v822 = vmul.f32 %v582, %v582
          %v823 = vmul.f32 %v583, %v583
          %v824 = vmul.f32 %v584, %v584
          %v825 = vmul.f32 %v585, %v585
          %v826 = vmul.f32 %v586, %v586
          %v827 = vmul.f32 %v587, %v587
          %v828 = vmul.f32 %v588, %v588
          %v829 = vmul.f32 %v589, %v589
          %v830 = vmul.f32 %v590, %v590
          %v831 = vmul.f32 %v591, %v591
          %v832 = vmul.f32 %v592, %v592
          %v833 = vmul.f32 %v593, %v593
          %v834 = vmul.f32 %v594, %v594
          %v835 = vmul.f32 %v595, %v595
          %v836 = vmul.f32 %v596, %v596
          %v837 = vmul.f32 %v597, %v597
          %v838 = vadd.f32 %v806, %v822
          %v839 = vadd.f32 %v807, %v823
          %v840 = vadd.f32 %v808, %v824
          %v841 = vadd.f32 %v809, %v825
          %v842 = vadd.f32 %v810, %v826
          %v843 = vadd.f32 %v811, %v827
          %v844 = vadd.f32 %v812, %v828
          %v845 = vadd.f32 %v813, %v829
          %v846 = vadd.f32 %v814, %v830
          %v847 = vadd.f32 %v815, %v831
          %v848 = vadd.f32 %v816, %v832
          %v849 = vadd.f32 %v817, %v833
          %v850 = vadd.f32 %v818, %v834
          %v851 = vadd.f32 %v819, %v835
          %v852 = vadd.f32 %v820, %v836
          %v853 = vadd.f32 %v821, %v837
          %v854 = vmul.f32 %v838, 0.5
          %v855 = vmul.f32 %v839, 0.5
          %v856 = vmul.f32 %v840, 0.5
          %v857 = vmul.f32 %v841, 0.5
          %v858 = vmul.f32 %v842, 0.5
          %v859 = vmul.f32 %v843, 0.5
          %v860 = vmul.f32 %v844, 0.5
          %v861 = vmul.f32 %v845, 0.5
          %v862 = vmul.f32 %v846, 0.5
          %v863 = vmul.f32 %v847, 0.5
          %v864 = vmul.f32 %v848, 0.5
          %v865 = vmul.f32 %v849, 0.5
          %v866 = vmul.f32 %v850, 0.5
          %v867 = vmul.f32 %v851, 0.5
          %v868 = vmul.f32 %v852, 0.5
          %v869 = vmul.f32 %v853, 0.5
          %v870 = vadd.f32 %v790, %v854
          %v871 = vadd.f32 %v791, %v855
          %v872 = vadd.f32 %v792, %v856
          %v873 = vadd.f32 %v793, %v857
          %v874 = vadd.f32 %v794, %v858
          %v875 = vadd.f32 %v795, %v859
          %v876 = vadd.f32 %v796, %v860
          %v877 = vadd.f32 %v797, %v861
          %v878 = vadd.f32 %v798, %v862
          %v879 = vadd.f32 %v799, %v863
          %v880 = vadd.f32 %v800, %v864
          %v881 = vadd.f32 %v801, %v865
          %v882 = vadd.f32 %v802, %v866
          %v883 = vadd.f32 %v803, %v867
          %v884 = vadd.f32 %v804, %v868
          %v885 = vadd.f32 %v805, %v869
          %v886 = vsub.f32 %v870, 0.5
          %v887 = vsub.f32 %v871, 0.5
          %v888 = vsub.f32 %v872, 0.5
          %v889 = vsub.f32 %v873, 0.5
          %v890 = vsub.f32 %v874, 0.5
          %v891 = vsub.f32 %v875, 0.5
          %v892 = vsub.f32 %v876, 0.5
          %v893 = vsub.f32 %v877, 0.5
          %v894 = vsub.f32 %v878, 0.5
          %v895 = vsub.f32 %v879, 0.5
          %v896 = vsub.f32 %v880, 0.5
          %v897 = vsub.f32 %v881, 0.5
          %v898 = vsub.f32 %v882, 0.5
          %v899 = vsub.f32 %v883, 0.5
          %v900 = vsub.f32 %v884, 0.5
          %v901 = vsub.f32 %v885, 0.5
          %v902 = vlaneseq
          %v903 = vshrl.u32 %v902, 7
          %v904 = vadd.s32 %v903, 8
          %v905 = vadd.s32 %v903, 16
          %v906 = vadd.s32 %v903, 24
          %v907 = vadd.s32 %v903, 32
          %v908 = vadd.s32 %v903, 40
          %v909 = vadd.s32 %v903, 48
          %v910 = vadd.s32 %v903, 56
          %v911 = vadd.s32 %v903, 64
          %v912 = vadd.s32 %v903, 72
          %v913 = vadd.s32 %v903, 80
          %v914 = vadd.s32 %v903, 88
          %v915 = vadd.s32 %v903, 96
          %v916 = vadd.s32 %v903, 104
          %v917 = vadd.s32 %v903, 112
          %v918 = vadd.s32 %v903, 120
          %vm919 = vcmp.lt.s32.totalorder %v903, 32
          %vm920 = vcmp.lt.s32.totalorder %v904, 32
          %vm921 = vcmp.lt.s32.totalorder %v905, 32
          %vm922 = vcmp.lt.s32.totalorder %v906, 32
          %vm923 = vcmp.lt.s32.totalorder %v907, 32
          %vm924 = vcmp.lt.s32.totalorder %v908, 32
          %vm925 = vcmp.lt.s32.totalorder %v909, 32
          %vm926 = vcmp.lt.s32.totalorder %v910, 32
          %vm927 = vcmp.lt.s32.totalorder %v911, 32
          %vm928 = vcmp.lt.s32.totalorder %v912, 32
          %vm929 = vcmp.lt.s32.totalorder %v913, 32
          %vm930 = vcmp.lt.s32.totalorder %v914, 32
          %vm931 = vcmp.lt.s32.totalorder %v915, 32
          %vm932 = vcmp.lt.s32.totalorder %v916, 32
          %vm933 = vcmp.lt.s32.totalorder %v917, 32
          %vm934 = vcmp.lt.s32.totalorder %v918, 32
          %v935 = vlaneseq
          %v936 = vand.u32 %v935, 127
          %vm937 = vcmp.lt.s32.totalorder %v936, 64
          %vm938 = vmand %vm919, %vm937
          %vm939 = vmand %vm920, %vm937
          %vm940 = vmand %vm921, %vm937
          %vm941 = vmand %vm922, %vm937
          %vm942 = vmand %vm923, %vm937
          %vm943 = vmand %vm924, %vm937
          %vm944 = vmand %vm925, %vm937
          %vm945 = vmand %vm926, %vm937
          %vm946 = vmand %vm927, %vm937
          %vm947 = vmand %vm928, %vm937
          %vm948 = vmand %vm929, %vm937
          %vm949 = vmand %vm930, %vm937
          %vm950 = vmand %vm931, %vm937
          %vm951 = vmand %vm932, %vm937
          %vm952 = vmand %vm933, %vm937
          %vm953 = vmand %vm934, %vm937
          %v954 = vsel %vm938, %v886, 0.0
          %v955 = vsel %vm939, %v887, 0.0
          %v956 = vsel %vm940, %v888, 0.0
          %v957 = vsel %vm941, %v889, 0.0
          %v958 = vsel %vm942, %v890, 0.0
          %v959 = vsel %vm943, %v891, 0.0
          %v960 = vsel %vm944, %v892, 0.0
          %v961 = vsel %vm945, %v893, 0.0
          %v962 = vsel %vm946, %v894, 0.0
          %v963 = vsel %vm947, %v895, 0.0
          %v964 = vsel %vm948, %v896, 0.0
          %v965 = vsel %vm949, %v897, 0.0
          %v966 = vsel %vm950, %v898, 0.0
          %v967 = vsel %vm951, %v899, 0.0
          %v968 = vsel %vm952, %v900, 0.0
          %v969 = vsel %vm953, %v901, 0.0
          %v970 = vadd.f32 %v954, %v955
          %v971 = vadd.f32 %v970, %v956
          %v972 = vadd.f32 %v971, %v957
          %v973 = vadd.f32 %v972, %v958
          %v974 = vadd.f32 %v973, %v959
          %v975 = vadd.f32 %v974, %v960
          %v976 = vadd.f32 %v975, %v961
          %v977 = vadd.f32 %v976, %v962
          %v978 = vadd.f32 %v977, %v963
          %v979 = vadd.f32 %v978, %v964
          %v980 = vadd.f32 %v979, %v965
          %v981 = vadd.f32 %v980, %v966
          %v982 = vadd.f32 %v981, %v967
          %v983 = vadd.f32 %v982, %v968
          %v984 = vadd.f32 %v983, %v969
          %985 = vadd.xlane.f32.xlu0 %v984
          %v986 = vpop.xlane.xlu0 %985
          %v987 = vrot.slane %v986, 4
          %v988 = vadd.f32 %v986, %v987
          %v989 = vrot.slane %v988, 2
          %v990 = vadd.f32 %v988, %v989
          %v991 = vrot.slane %v990, 1
          %v992 = vadd.f32 %v990, %v991
          %s993 = vtos %v992
          %s994 = sadd.f32 %s993, 0.0
          %v995 = vld [vmem:[%s7] sm:$0x1]
          %v996 = vld [vmem:[%s8] sm:$0x1]
          %v997 = vmax.f32 %v996, 0.0
          %v998 = vand.u32 2147483647, %v996
          %v999 = vsub.f32 0.0, %v998
          %v1000 = vmul.f32 %v999, 1.442695
          %v1001 = vpow.pop %v1000
          %v1002 = vadd.f32 %v1001, 1.0
          %v1003 = vlog2.pop %v1002
          %v1004 = vmul.f32 %v1003, 0.6931472
          %v1005 = vadd.f32 %v997, %v1004
          %v1006 = vlog2.pop %v1005
          %v1007 = vmul.f32 %v1006, 0.6931472
          %v1008 = vsub.f32 0.0, %v1007
          %v1009 = vmul.f32 %v1005, %v1005
          %v1010 = vmul.f32 %v995, %v995
          %v1011 = vadd.f32 %v1009, %v1010
          %v1012 = vmul.f32 %v1011, 0.5
          %v1013 = vadd.f32 %v1008, %v1012
          %v1014 = vsub.f32 %v1013, 0.5
          %vm1015 = vcmp.lt.s32.totalorder %v903, 1
          %vm1016 = vmand %vm1015, %vm937
          %v1017 = vsel %vm1016, %v1014, 0.0
          %vm1018 = vcmask 1040384
          %v1019 = vsel %vm1018, %v1017, 0.0
          %1020 = vadd.xlane.f32.xlu0 %v1019
          %v1021 = vpop.xlane.xlu0 %1020
          %v1022 = vrot.slane %v1021, 4
          %v1023 = vadd.f32 %v1021, %v1022
          %v1024 = vrot.slane %v1023, 2
          %v1025 = vadd.f32 %v1023, %v1024
          %v1026 = vrot.slane %v1025, 1
          %v1027 = vadd.f32 %v1025, %v1026
          %s1028 = vtos %v1027
          %s1029 = sadd.f32 %s994, %s1028
          %v1030 = vld [vmem:[#allocation2] sm:$0xff]
          %v1031 = vld [vmem:[#allocation2 + $0x8] sm:$0xff]
          %v1032 = vld [vmem:[#allocation2 + $0x10] sm:$0xff]
          %v1033 = vld [vmem:[#allocation2 + $0x18] sm:$0xff]
          %v1034 = vld [vmem:[#allocation2 + $0x20] sm:$0xff]
          %v1035 = vld [vmem:[#allocation2 + $0x28] sm:$0xff]
          %v1036 = vld [vmem:[#allocation2 + $0x30] sm:$0xff]
          %v1037 = vld [vmem:[#allocation2 + $0x38] sm:$0xff]
          %v1038 = vld [vmem:[#allocation2 + $0x40] sm:$0xff]
          %v1039 = vld [vmem:[#allocation2 + $0x48] sm:$0xff]
          %v1040 = vld [vmem:[#allocation2 + $0x50] sm:$0xff]
          %v1041 = vld [vmem:[#allocation2 + $0x58] sm:$0xff]
          %v1042 = vld [vmem:[#allocation2 + $0x60] sm:$0xff]
          %v1043 = vld [vmem:[#allocation2 + $0x68] sm:$0xff]
          %v1044 = vld [vmem:[#allocation2 + $0x70] sm:$0xff]
          %v1045 = vld [vmem:[#allocation2 + $0x78] sm:$0xff]
          %v1046 = vld [vmem:[#allocation4] sm:$0xff]
          %v1047 = vld [vmem:[#allocation4 + $0x8] sm:$0xff]
          %v1048 = vld [vmem:[#allocation4 + $0x10] sm:$0xff]
          %v1049 = vld [vmem:[#allocation4 + $0x18] sm:$0xff]
          %v1050 = vld [vmem:[#allocation4 + $0x20] sm:$0xff]
          %v1051 = vld [vmem:[#allocation4 + $0x28] sm:$0xff]
          %v1052 = vld [vmem:[#allocation4 + $0x30] sm:$0xff]
          %v1053 = vld [vmem:[#allocation4 + $0x38] sm:$0xff]
          %v1054 = vld [vmem:[#allocation4 + $0x40] sm:$0xff]
          %v1055 = vld [vmem:[#allocation4 + $0x48] sm:$0xff]
          %v1056 = vld [vmem:[#allocation4 + $0x50] sm:$0xff]
          %v1057 = vld [vmem:[#allocation4 + $0x58] sm:$0xff]
          %v1058 = vld [vmem:[#allocation4 + $0x60] sm:$0xff]
          %v1059 = vld [vmem:[#allocation4 + $0x68] sm:$0xff]
          %v1060 = vld [vmem:[#allocation4 + $0x70] sm:$0xff]
          %v1061 = vld [vmem:[#allocation4 + $0x78] sm:$0xff]
          %v1062 = vmax.f32 %v1046, 0.0
          %v1063 = vmax.f32 %v1047, 0.0
          %v1064 = vmax.f32 %v1048, 0.0
          %v1065 = vmax.f32 %v1049, 0.0
          %v1066 = vmax.f32 %v1050, 0.0
          %v1067 = vmax.f32 %v1051, 0.0
          %v1068 = vmax.f32 %v1052, 0.0
          %v1069 = vmax.f32 %v1053, 0.0
          %v1070 = vmax.f32 %v1054, 0.0
          %v1071 = vmax.f32 %v1055, 0.0
          %v1072 = vmax.f32 %v1056, 0.0
          %v1073 = vmax.f32 %v1057, 0.0
          %v1074 = vmax.f32 %v1058, 0.0
          %v1075 = vmax.f32 %v1059, 0.0
          %v1076 = vmax.f32 %v1060, 0.0
          %v1077 = vmax.f32 %v1061, 0.0
          %v1078 = vand.u32 2147483647, %v1046
          %v1079 = vand.u32 2147483647, %v1047
          %v1080 = vand.u32 2147483647, %v1048
          %v1081 = vand.u32 2147483647, %v1049
          %v1082 = vand.u32 2147483647, %v1050
          %v1083 = vand.u32 2147483647, %v1051
          %v1084 = vand.u32 2147483647, %v1052
          %v1085 = vand.u32 2147483647, %v1053
          %v1086 = vand.u32 2147483647, %v1054
          %v1087 = vand.u32 2147483647, %v1055
          %v1088 = vand.u32 2147483647, %v1056
          %v1089 = vand.u32 2147483647, %v1057
          %v1090 = vand.u32 2147483647, %v1058
          %v1091 = vand.u32 2147483647, %v1059
          %v1092 = vand.u32 2147483647, %v1060
          %v1093 = vand.u32 2147483647, %v1061
          %v1094 = vsub.f32 0.0, %v1078
          %v1095 = vsub.f32 0.0, %v1079
          %v1096 = vsub.f32 0.0, %v1080
          %v1097 = vsub.f32 0.0, %v1081
          %v1098 = vsub.f32 0.0, %v1082
          %v1099 = vsub.f32 0.0, %v1083
          %v1100 = vsub.f32 0.0, %v1084
          %v1101 = vsub.f32 0.0, %v1085
          %v1102 = vsub.f32 0.0, %v1086
          %v1103 = vsub.f32 0.0, %v1087
          %v1104 = vsub.f32 0.0, %v1088
          %v1105 = vsub.f32 0.0, %v1089
          %v1106 = vsub.f32 0.0, %v1090
          %v1107 = vsub.f32 0.0, %v1091
          %v1108 = vsub.f32 0.0, %v1092
          %v1109 = vsub.f32 0.0, %v1093
          %v1110 = vmul.f32 %v1094, 1.442695
          %v1111 = vpow.pop %v1110
          %v1112 = vmul.f32 %v1095, 1.442695
          %v1113 = vpow.pop %v1112
          %v1114 = vmul.f32 %v1096, 1.442695
          %v1115 = vpow.pop %v1114
          %v1116 = vmul.f32 %v1097, 1.442695
          %v1117 = vpow.pop %v1116
          %v1118 = vmul.f32 %v1098, 1.442695
          %v1119 = vpow.pop %v1118
          %v1120 = vmul.f32 %v1099, 1.442695
          %v1121 = vpow.pop %v1120
          %v1122 = vmul.f32 %v1100, 1.442695
          %v1123 = vpow.pop %v1122
          %v1124 = vmul.f32 %v1101, 1.442695
          %v1125 = vpow.pop %v1124
          %v1126 = vmul.f32 %v1102, 1.442695
          %v1127 = vpow.pop %v1126
          %v1128 = vmul.f32 %v1103, 1.442695
          %v1129 = vpow.pop %v1128
          %v1130 = vmul.f32 %v1104, 1.442695
          %v1131 = vpow.pop %v1130
          %v1132 = vmul.f32 %v1105, 1.442695
          %v1133 = vpow.pop %v1132
          %v1134 = vmul.f32 %v1106, 1.442695
          %v1135 = vpow.pop %v1134
          %v1136 = vmul.f32 %v1107, 1.442695
          %v1137 = vpow.pop %v1136
          %v1138 = vmul.f32 %v1108, 1.442695
          %v1139 = vpow.pop %v1138
          %v1140 = vmul.f32 %v1109, 1.442695
          %v1141 = vpow.pop %v1140
          %v1142 = vadd.f32 %v1111, 1.0
          %v1143 = vadd.f32 %v1113, 1.0
          %v1144 = vadd.f32 %v1115, 1.0
          %v1145 = vadd.f32 %v1117, 1.0
          %v1146 = vadd.f32 %v1119, 1.0
          %v1147 = vadd.f32 %v1121, 1.0
          %v1148 = vadd.f32 %v1123, 1.0
          %v1149 = vadd.f32 %v1125, 1.0
          %v1150 = vadd.f32 %v1127, 1.0
          %v1151 = vadd.f32 %v1129, 1.0
          %v1152 = vadd.f32 %v1131, 1.0
          %v1153 = vadd.f32 %v1133, 1.0
          %v1154 = vadd.f32 %v1135, 1.0
          %v1155 = vadd.f32 %v1137, 1.0
          %v1156 = vadd.f32 %v1139, 1.0
          %v1157 = vadd.f32 %v1141, 1.0
          %v1158 = vlog2.pop %v1142
          %v1159 = vmul.f32 %v1158, 0.6931472
          %v1160 = vlog2.pop %v1143
          %v1161 = vmul.f32 %v1160, 0.6931472
          %v1162 = vlog2.pop %v1144
          %v1163 = vmul.f32 %v1162, 0.6931472
          %v1164 = vlog2.pop %v1145
          %v1165 = vmul.f32 %v1164, 0.6931472
          %v1166 = vlog2.pop %v1146
          %v1167 = vmul.f32 %v1166, 0.6931472
          %v1168 = vlog2.pop %v1147
          %v1169 = vmul.f32 %v1168, 0.6931472
          %v1170 = vlog2.pop %v1148
          %v1171 = vmul.f32 %v1170, 0.6931472
          %v1172 = vlog2.pop %v1149
          %v1173 = vmul.f32 %v1172, 0.6931472
          %v1174 = vlog2.pop %v1150
          %v1175 = vmul.f32 %v1174, 0.6931472
          %v1176 = vlog2.pop %v1151
          %v1177 = vmul.f32 %v1176, 0.6931472
          %v1178 = vlog2.pop %v1152
          %v1179 = vmul.f32 %v1178, 0.6931472
          %v1180 = vlog2.pop %v1153
          %v1181 = vmul.f32 %v1180, 0.6931472
          %v1182 = vlog2.pop %v1154
          %v1183 = vmul.f32 %v1182, 0.6931472
          %v1184 = vlog2.pop %v1155
          %v1185 = vmul.f32 %v1184, 0.6931472
          %v1186 = vlog2.pop %v1156
          %v1187 = vmul.f32 %v1186, 0.6931472
          %v1188 = vlog2.pop %v1157
          %v1189 = vmul.f32 %v1188, 0.6931472
          %v1190 = vadd.f32 %v1062, %v1159
          %v1191 = vadd.f32 %v1063, %v1161
          %v1192 = vadd.f32 %v1064, %v1163
          %v1193 = vadd.f32 %v1065, %v1165
          %v1194 = vadd.f32 %v1066, %v1167
          %v1195 = vadd.f32 %v1067, %v1169
          %v1196 = vadd.f32 %v1068, %v1171
          %v1197 = vadd.f32 %v1069, %v1173
          %v1198 = vadd.f32 %v1070, %v1175
          %v1199 = vadd.f32 %v1071, %v1177
          %v1200 = vadd.f32 %v1072, %v1179
          %v1201 = vadd.f32 %v1073, %v1181
          %v1202 = vadd.f32 %v1074, %v1183
          %v1203 = vadd.f32 %v1075, %v1185
          %v1204 = vadd.f32 %v1076, %v1187
          %v1205 = vadd.f32 %v1077, %v1189
          %v1206 = vlog2.pop %v1190
          %v1207 = vmul.f32 %v1206, 0.6931472
          %v1208 = vlog2.pop %v1191
          %v1209 = vmul.f32 %v1208, 0.6931472
          %v1210 = vlog2.pop %v1192
          %v1211 = vmul.f32 %v1210, 0.6931472
          %v1212 = vlog2.pop %v1193
          %v1213 = vmul.f32 %v1212, 0.6931472
          %v1214 = vlog2.pop %v1194
          %v1215 = vmul.f32 %v1214, 0.6931472
          %v1216 = vlog2.pop %v1195
          %v1217 = vmul.f32 %v1216, 0.6931472
          %v1218 = vlog2.pop %v1196
          %v1219 = vmul.f32 %v1218, 0.6931472
          %v1220 = vlog2.pop %v1197
          %v1221 = vmul.f32 %v1220, 0.6931472
          %v1222 = vlog2.pop %v1198
          %v1223 = vmul.f32 %v1222, 0.6931472
          %v1224 = vlog2.pop %v1199
          %v1225 = vmul.f32 %v1224, 0.6931472
          %v1226 = vlog2.pop %v1200
          %v1227 = vmul.f32 %v1226, 0.6931472
          %v1228 = vlog2.pop %v1201
          %v1229 = vmul.f32 %v1228, 0.6931472
          %v1230 = vlog2.pop %v1202
          %v1231 = vmul.f32 %v1230, 0.6931472
          %v1232 = vlog2.pop %v1203
          %v1233 = vmul.f32 %v1232, 0.6931472
          %v1234 = vlog2.pop %v1204
          %v1235 = vmul.f32 %v1234, 0.6931472
          %v1236 = vlog2.pop %v1205
          %v1237 = vmul.f32 %v1236, 0.6931472
          %v1238 = vsub.f32 0.0, %v1207
          %v1239 = vsub.f32 0.0, %v1209
          %v1240 = vsub.f32 0.0, %v1211
          %v1241 = vsub.f32 0.0, %v1213
          %v1242 = vsub.f32 0.0, %v1215
          %v1243 = vsub.f32 0.0, %v1217
          %v1244 = vsub.f32 0.0, %v1219
          %v1245 = vsub.f32 0.0, %v1221
          %v1246 = vsub.f32 0.0, %v1223
          %v1247 = vsub.f32 0.0, %v1225
          %v1248 = vsub.f32 0.0, %v1227
          %v1249 = vsub.f32 0.0, %v1229
          %v1250 = vsub.f32 0.0, %v1231
          %v1251 = vsub.f32 0.0, %v1233
          %v1252 = vsub.f32 0.0, %v1235
          %v1253 = vsub.f32 0.0, %v1237
          %v1254 = vmul.f32 %v1190, %v1190
          %v1255 = vmul.f32 %v1191, %v1191
          %v1256 = vmul.f32 %v1192, %v1192
          %v1257 = vmul.f32 %v1193, %v1193
          %v1258 = vmul.f32 %v1194, %v1194
          %v1259 = vmul.f32 %v1195, %v1195
          %v1260 = vmul.f32 %v1196, %v1196
          %v1261 = vmul.f32 %v1197, %v1197
          %v1262 = vmul.f32 %v1198, %v1198
          %v1263 = vmul.f32 %v1199, %v1199
          %v1264 = vmul.f32 %v1200, %v1200
          %v1265 = vmul.f32 %v1201, %v1201
          %v1266 = vmul.f32 %v1202, %v1202
          %v1267 = vmul.f32 %v1203, %v1203
          %v1268 = vmul.f32 %v1204, %v1204
          %v1269 = vmul.f32 %v1205, %v1205
          %v1270 = vmul.f32 %v1030, %v1030
          %v1271 = vmul.f32 %v1031, %v1031
          %v1272 = vmul.f32 %v1032, %v1032
          %v1273 = vmul.f32 %v1033, %v1033
          %v1274 = vmul.f32 %v1034, %v1034
          %v1275 = vmul.f32 %v1035, %v1035
          %v1276 = vmul.f32 %v1036, %v1036
          %v1277 = vmul.f32 %v1037, %v1037
          %v1278 = vmul.f32 %v1038, %v1038
          %v1279 = vmul.f32 %v1039, %v1039
          %v1280 = vmul.f32 %v1040, %v1040
          %v1281 = vmul.f32 %v1041, %v1041
          %v1282 = vmul.f32 %v1042, %v1042
          %v1283 = vmul.f32 %v1043, %v1043
          %v1284 = vmul.f32 %v1044, %v1044
          %v1285 = vmul.f32 %v1045, %v1045
          %v1286 = vadd.f32 %v1254, %v1270
          %v1287 = vadd.f32 %v1255, %v1271
          %v1288 = vadd.f32 %v1256, %v1272
          %v1289 = vadd.f32 %v1257, %v1273
          %v1290 = vadd.f32 %v1258, %v1274
          %v1291 = vadd.f32 %v1259, %v1275
          %v1292 = vadd.f32 %v1260, %v1276
          %v1293 = vadd.f32 %v1261, %v1277
          %v1294 = vadd.f32 %v1262, %v1278
          %v1295 = vadd.f32 %v1263, %v1279
          %v1296 = vadd.f32 %v1264, %v1280
          %v1297 = vadd.f32 %v1265, %v1281
          %v1298 = vadd.f32 %v1266, %v1282
          %v1299 = vadd.f32 %v1267, %v1283
          %v1300 = vadd.f32 %v1268, %v1284
          %v1301 = vadd.f32 %v1269, %v1285
          %v1302 = vmul.f32 %v1286, 0.5
          %v1303 = vmul.f32 %v1287, 0.5
          %v1304 = vmul.f32 %v1288, 0.5
          %v1305 = vmul.f32 %v1289, 0.5
          %v1306 = vmul.f32 %v1290, 0.5
          %v1307 = vmul.f32 %v1291, 0.5
          %v1308 = vmul.f32 %v1292, 0.5
          %v1309 = vmul.f32 %v1293, 0.5
          %v1310 = vmul.f32 %v1294, 0.5
          %v1311 = vmul.f32 %v1295, 0.5
          %v1312 = vmul.f32 %v1296, 0.5
          %v1313 = vmul.f32 %v1297, 0.5
          %v1314 = vmul.f32 %v1298, 0.5
          %v1315 = vmul.f32 %v1299, 0.5
          %v1316 = vmul.f32 %v1300, 0.5
          %v1317 = vmul.f32 %v1301, 0.5
          %v1318 = vadd.f32 %v1238, %v1302
          %v1319 = vadd.f32 %v1239, %v1303
          %v1320 = vadd.f32 %v1240, %v1304
          %v1321 = vadd.f32 %v1241, %v1305
          %v1322 = vadd.f32 %v1242, %v1306
          %v1323 = vadd.f32 %v1243, %v1307
          %v1324 = vadd.f32 %v1244, %v1308
          %v1325 = vadd.f32 %v1245, %v1309
          %v1326 = vadd.f32 %v1246, %v1310
          %v1327 = vadd.f32 %v1247, %v1311
          %v1328 = vadd.f32 %v1248, %v1312
          %v1329 = vadd.f32 %v1249, %v1313
          %v1330 = vadd.f32 %v1250, %v1314
          %v1331 = vadd.f32 %v1251, %v1315
          %v1332 = vadd.f32 %v1252, %v1316
          %v1333 = vadd.f32 %v1253, %v1317
          %v1334 = vsub.f32 %v1318, 0.5
          %v1335 = vsub.f32 %v1319, 0.5
          %v1336 = vsub.f32 %v1320, 0.5
          %v1337 = vsub.f32 %v1321, 0.5
          %v1338 = vsub.f32 %v1322, 0.5
          %v1339 = vsub.f32 %v1323, 0.5
          %v1340 = vsub.f32 %v1324, 0.5
          %v1341 = vsub.f32 %v1325, 0.5
          %v1342 = vsub.f32 %v1326, 0.5
          %v1343 = vsub.f32 %v1327, 0.5
          %v1344 = vsub.f32 %v1328, 0.5
          %v1345 = vsub.f32 %v1329, 0.5
          %v1346 = vsub.f32 %v1330, 0.5
          %v1347 = vsub.f32 %v1331, 0.5
          %v1348 = vsub.f32 %v1332, 0.5
          %v1349 = vsub.f32 %v1333, 0.5
          %vm1350 = vcmp.lt.s32.totalorder %v903, 64
          %vm1351 = vcmp.lt.s32.totalorder %v904, 64
          %vm1352 = vcmp.lt.s32.totalorder %v905, 64
          %vm1353 = vcmp.lt.s32.totalorder %v906, 64
          %vm1354 = vcmp.lt.s32.totalorder %v907, 64
          %vm1355 = vcmp.lt.s32.totalorder %v908, 64
          %vm1356 = vcmp.lt.s32.totalorder %v909, 64
          %vm1357 = vcmp.lt.s32.totalorder %v910, 64
          %vm1358 = vcmp.lt.s32.totalorder %v911, 64
          %vm1359 = vcmp.lt.s32.totalorder %v912, 64
          %vm1360 = vcmp.lt.s32.totalorder %v913, 64
          %vm1361 = vcmp.lt.s32.totalorder %v914, 64
          %vm1362 = vcmp.lt.s32.totalorder %v915, 64
          %vm1363 = vcmp.lt.s32.totalorder %v916, 64
          %vm1364 = vcmp.lt.s32.totalorder %v917, 64
          %vm1365 = vcmp.lt.s32.totalorder %v918, 64
          %vm1366 = vcmp.lt.s32.totalorder %v936, 32
          %vm1367 = vmand %vm1350, %vm1366
          %vm1368 = vmand %vm1351, %vm1366
          %vm1369 = vmand %vm1352, %vm1366
          %vm1370 = vmand %vm1353, %vm1366
          %vm1371 = vmand %vm1354, %vm1366
          %vm1372 = vmand %vm1355, %vm1366
          %vm1373 = vmand %vm1356, %vm1366
          %vm1374 = vmand %vm1357, %vm1366
          %vm1375 = vmand %vm1358, %vm1366
          %vm1376 = vmand %vm1359, %vm1366
          %vm1377 = vmand %vm1360, %vm1366
          %vm1378 = vmand %vm1361, %vm1366
          %vm1379 = vmand %vm1362, %vm1366
          %vm1380 = vmand %vm1363, %vm1366
          %vm1381 = vmand %vm1364, %vm1366
          %vm1382 = vmand %vm1365, %vm1366
          %v1383 = vsel %vm1367, %v1334, 0.0
          %v1384 = vsel %vm1368, %v1335, 0.0
          %v1385 = vsel %vm1369, %v1336, 0.0
          %v1386 = vsel %vm1370, %v1337, 0.0
          %v1387 = vsel %vm1371, %v1338, 0.0
          %v1388 = vsel %vm1372, %v1339, 0.0
          %v1389 = vsel %vm1373, %v1340, 0.0
          %v1390 = vsel %vm1374, %v1341, 0.0
          %v1391 = vsel %vm1375, %v1342, 0.0
          %v1392 = vsel %vm1376, %v1343, 0.0
          %v1393 = vsel %vm1377, %v1344, 0.0
          %v1394 = vsel %vm1378, %v1345, 0.0
          %v1395 = vsel %vm1379, %v1346, 0.0
          %v1396 = vsel %vm1380, %v1347, 0.0
          %v1397 = vsel %vm1381, %v1348, 0.0
          %v1398 = vsel %vm1382, %v1349, 0.0
          %v1399 = vadd.f32 %v1383, %v1384
          %v1400 = vadd.f32 %v1399, %v1385
          %v1401 = vadd.f32 %v1400, %v1386
          %v1402 = vadd.f32 %v1401, %v1387
          %v1403 = vadd.f32 %v1402, %v1388
          %v1404 = vadd.f32 %v1403, %v1389
          %v1405 = vadd.f32 %v1404, %v1390
          %v1406 = vadd.f32 %v1405, %v1391
          %v1407 = vadd.f32 %v1406, %v1392
          %v1408 = vadd.f32 %v1407, %v1393
          %v1409 = vadd.f32 %v1408, %v1394
          %v1410 = vadd.f32 %v1409, %v1395
          %v1411 = vadd.f32 %v1410, %v1396
          %v1412 = vadd.f32 %v1411, %v1397
          %v1413 = vadd.f32 %v1412, %v1398
          %1414 = vadd.xlane.f32.xlu0 %v1413
          %v1415 = vpop.xlane.xlu0 %1414
          %v1416 = vrot.slane %v1415, 4
          %v1417 = vadd.f32 %v1415, %v1416
          %v1418 = vrot.slane %v1417, 2
          %v1419 = vadd.f32 %v1417, %v1418
          %v1420 = vrot.slane %v1419, 1
          %v1421 = vadd.f32 %v1419, %v1420
          %s1422 = vtos %v1421
          %s1423 = sadd.f32 %s1029, %s1422
          %v1424 = vld [vmem:[%s7 + $0x1] sm:$0x1]
          %v1425 = vld [vmem:[%s8 + $0x1] sm:$0x1]
          %v1426 = vmax.f32 %v1425, 0.0
          %v1427 = vand.u32 2147483647, %v1425
          %v1428 = vsub.f32 0.0, %v1427
          %v1429 = vmul.f32 %v1428, 1.442695
          %v1430 = vpow.pop %v1429
          %v1431 = vadd.f32 %v1430, 1.0
          %v1432 = vlog2.pop %v1431
          %v1433 = vmul.f32 %v1432, 0.6931472
          %v1434 = vadd.f32 %v1426, %v1433
          %v1435 = vlog2.pop %v1434
          %v1436 = vmul.f32 %v1435, 0.6931472
          %v1437 = vsub.f32 0.0, %v1436
          %v1438 = vmul.f32 %v1434, %v1434
          %v1439 = vmul.f32 %v1424, %v1424
          %v1440 = vadd.f32 %v1438, %v1439
          %v1441 = vmul.f32 %v1440, 0.5
          %v1442 = vadd.f32 %v1437, %v1441
          %v1443 = vsub.f32 %v1442, 0.5
          %vm1444 = vmand %vm1015, %vm1366
          %v1445 = vsel %vm1444, %v1443, 0.0
          %v1446 = vsel %vm1018, %v1445, 0.0
          %1447 = vadd.xlane.f32.xlu0 %v1446
          %v1448 = vpop.xlane.xlu0 %1447
          %v1449 = vrot.slane %v1448, 4
          %v1450 = vadd.f32 %v1448, %v1449
          %v1451 = vrot.slane %v1450, 2
          %v1452 = vadd.f32 %v1450, %v1451
          %v1453 = vrot.slane %v1452, 1
          %v1454 = vadd.f32 %v1452, %v1453
          %s1455 = vtos %v1454
          %s1456 = sadd.f32 %s1423, %s1455
          %v1457 = vld [vmem:[#allocation6] sm:$0xff]
          %v1458 = vld [vmem:[#allocation6 + $0x8] sm:$0xff]
          %v1459 = vld [vmem:[#allocation6 + $0x10] sm:$0xff]
          %v1460 = vld [vmem:[#allocation6 + $0x18] sm:$0xff]
          %v1461 = vld [vmem:[#allocation6 + $0x20] sm:$0xff]
          %v1462 = vld [vmem:[#allocation6 + $0x28] sm:$0xff]
          %v1463 = vld [vmem:[#allocation6 + $0x30] sm:$0xff]
          %v1464 = vld [vmem:[#allocation6 + $0x38] sm:$0xff]
          %v1465 = vld [vmem:[#allocation6 + $0x40] sm:$0xff]
          %v1466 = vld [vmem:[#allocation6 + $0x48] sm:$0xff]
          %v1467 = vld [vmem:[#allocation6 + $0x50] sm:$0xff]
          %v1468 = vld [vmem:[#allocation6 + $0x58] sm:$0xff]
          %v1469 = vld [vmem:[#allocation6 + $0x60] sm:$0xff]
          %v1470 = vld [vmem:[#allocation6 + $0x68] sm:$0xff]
          %v1471 = vld [vmem:[#allocation6 + $0x70] sm:$0xff]
          %v1472 = vld [vmem:[#allocation6 + $0x78] sm:$0xff]
          %v1473 = vld [vmem:[#allocation7] sm:$0xff]
          %v1474 = vld [vmem:[#allocation7 + $0x8] sm:$0xff]
          %v1475 = vld [vmem:[#allocation7 + $0x10] sm:$0xff]
          %v1476 = vld [vmem:[#allocation7 + $0x18] sm:$0xff]
          %v1477 = vld [vmem:[#allocation7 + $0x20] sm:$0xff]
          %v1478 = vld [vmem:[#allocation7 + $0x28] sm:$0xff]
          %v1479 = vld [vmem:[#allocation7 + $0x30] sm:$0xff]
          %v1480 = vld [vmem:[#allocation7 + $0x38] sm:$0xff]
          %v1481 = vld [vmem:[#allocation7 + $0x40] sm:$0xff]
          %v1482 = vld [vmem:[#allocation7 + $0x48] sm:$0xff]
          %v1483 = vld [vmem:[#allocation7 + $0x50] sm:$0xff]
          %v1484 = vld [vmem:[#allocation7 + $0x58] sm:$0xff]
          %v1485 = vld [vmem:[#allocation7 + $0x60] sm:$0xff]
          %v1486 = vld [vmem:[#allocation7 + $0x68] sm:$0xff]
          %v1487 = vld [vmem:[#allocation7 + $0x70] sm:$0xff]
          %v1488 = vld [vmem:[#allocation7 + $0x78] sm:$0xff]
          %v1489 = vmax.f32 %v1473, 0.0
          %v1490 = vmax.f32 %v1474, 0.0
          %v1491 = vmax.f32 %v1475, 0.0
          %v1492 = vmax.f32 %v1476, 0.0
          %v1493 = vmax.f32 %v1477, 0.0
          %v1494 = vmax.f32 %v1478, 0.0
          %v1495 = vmax.f32 %v1479, 0.0
          %v1496 = vmax.f32 %v1480, 0.0
          %v1497 = vmax.f32 %v1481, 0.0
          %v1498 = vmax.f32 %v1482, 0.0
          %v1499 = vmax.f32 %v1483, 0.0
          %v1500 = vmax.f32 %v1484, 0.0
          %v1501 = vmax.f32 %v1485, 0.0
          %v1502 = vmax.f32 %v1486, 0.0
          %v1503 = vmax.f32 %v1487, 0.0
          %v1504 = vmax.f32 %v1488, 0.0
          %v1505 = vand.u32 2147483647, %v1473
          %v1506 = vand.u32 2147483647, %v1474
          %v1507 = vand.u32 2147483647, %v1475
          %v1508 = vand.u32 2147483647, %v1476
          %v1509 = vand.u32 2147483647, %v1477
          %v1510 = vand.u32 2147483647, %v1478
          %v1511 = vand.u32 2147483647, %v1479
          %v1512 = vand.u32 2147483647, %v1480
          %v1513 = vand.u32 2147483647, %v1481
          %v1514 = vand.u32 2147483647, %v1482
          %v1515 = vand.u32 2147483647, %v1483
          %v1516 = vand.u32 2147483647, %v1484
          %v1517 = vand.u32 2147483647, %v1485
          %v1518 = vand.u32 2147483647, %v1486
          %v1519 = vand.u32 2147483647, %v1487
          %v1520 = vand.u32 2147483647, %v1488
          %v1521 = vsub.f32 0.0, %v1505
          %v1522 = vsub.f32 0.0, %v1506
          %v1523 = vsub.f32 0.0, %v1507
          %v1524 = vsub.f32 0.0, %v1508
          %v1525 = vsub.f32 0.0, %v1509
          %v1526 = vsub.f32 0.0, %v1510
          %v1527 = vsub.f32 0.0, %v1511
          %v1528 = vsub.f32 0.0, %v1512
          %v1529 = vsub.f32 0.0, %v1513
          %v1530 = vsub.f32 0.0, %v1514
          %v1531 = vsub.f32 0.0, %v1515
          %v1532 = vsub.f32 0.0, %v1516
          %v1533 = vsub.f32 0.0, %v1517
          %v1534 = vsub.f32 0.0, %v1518
          %v1535 = vsub.f32 0.0, %v1519
          %v1536 = vsub.f32 0.0, %v1520
          %v1537 = vmul.f32 %v1521, 1.442695
          %v1538 = vpow.pop %v1537
          %v1539 = vmul.f32 %v1522, 1.442695
          %v1540 = vpow.pop %v1539
          %v1541 = vmul.f32 %v1523, 1.442695
          %v1542 = vpow.pop %v1541
          %v1543 = vmul.f32 %v1524, 1.442695
          %v1544 = vpow.pop %v1543
          %v1545 = vmul.f32 %v1525, 1.442695
          %v1546 = vpow.pop %v1545
          %v1547 = vmul.f32 %v1526, 1.442695
          %v1548 = vpow.pop %v1547
          %v1549 = vmul.f32 %v1527, 1.442695
          %v1550 = vpow.pop %v1549
          %v1551 = vmul.f32 %v1528, 1.442695
          %v1552 = vpow.pop %v1551
          %v1553 = vmul.f32 %v1529, 1.442695
          %v1554 = vpow.pop %v1553
          %v1555 = vmul.f32 %v1530, 1.442695
          %v1556 = vpow.pop %v1555
          %v1557 = vmul.f32 %v1531, 1.442695
          %v1558 = vpow.pop %v1557
          %v1559 = vmul.f32 %v1532, 1.442695
          %v1560 = vpow.pop %v1559
          %v1561 = vmul.f32 %v1533, 1.442695
          %v1562 = vpow.pop %v1561
          %v1563 = vmul.f32 %v1534, 1.442695
          %v1564 = vpow.pop %v1563
          %v1565 = vmul.f32 %v1535, 1.442695
          %v1566 = vpow.pop %v1565
          %v1567 = vmul.f32 %v1536, 1.442695
          %v1568 = vpow.pop %v1567
          %v1569 = vadd.f32 %v1538, 1.0
          %v1570 = vadd.f32 %v1540, 1.0
          %v1571 = vadd.f32 %v1542, 1.0
          %v1572 = vadd.f32 %v1544, 1.0
          %v1573 = vadd.f32 %v1546, 1.0
          %v1574 = vadd.f32 %v1548, 1.0
          %v1575 = vadd.f32 %v1550, 1.0
          %v1576 = vadd.f32 %v1552, 1.0
          %v1577 = vadd.f32 %v1554, 1.0
          %v1578 = vadd.f32 %v1556, 1.0
          %v1579 = vadd.f32 %v1558, 1.0
          %v1580 = vadd.f32 %v1560, 1.0
          %v1581 = vadd.f32 %v1562, 1.0
          %v1582 = vadd.f32 %v1564, 1.0
          %v1583 = vadd.f32 %v1566, 1.0
          %v1584 = vadd.f32 %v1568, 1.0
          %v1585 = vlog2.pop %v1569
          %v1586 = vmul.f32 %v1585, 0.6931472
          %v1587 = vlog2.pop %v1570
          %v1588 = vmul.f32 %v1587, 0.6931472
          %v1589 = vlog2.pop %v1571
          %v1590 = vmul.f32 %v1589, 0.6931472
          %v1591 = vlog2.pop %v1572
          %v1592 = vmul.f32 %v1591, 0.6931472
          %v1593 = vlog2.pop %v1573
          %v1594 = vmul.f32 %v1593, 0.6931472
          %v1595 = vlog2.pop %v1574
          %v1596 = vmul.f32 %v1595, 0.6931472
          %v1597 = vlog2.pop %v1575
          %v1598 = vmul.f32 %v1597, 0.6931472
          %v1599 = vlog2.pop %v1576
          %v1600 = vmul.f32 %v1599, 0.6931472
          %v1601 = vlog2.pop %v1577
          %v1602 = vmul.f32 %v1601, 0.6931472
          %v1603 = vlog2.pop %v1578
          %v1604 = vmul.f32 %v1603, 0.6931472
          %v1605 = vlog2.pop %v1579
          %v1606 = vmul.f32 %v1605, 0.6931472
          %v1607 = vlog2.pop %v1580
          %v1608 = vmul.f32 %v1607, 0.6931472
          %v1609 = vlog2.pop %v1581
          %v1610 = vmul.f32 %v1609, 0.6931472
          %v1611 = vlog2.pop %v1582
          %v1612 = vmul.f32 %v1611, 0.6931472
          %v1613 = vlog2.pop %v1583
          %v1614 = vmul.f32 %v1613, 0.6931472
          %v1615 = vlog2.pop %v1584
          %v1616 = vmul.f32 %v1615, 0.6931472
          %v1617 = vadd.f32 %v1489, %v1586
          %v1618 = vadd.f32 %v1490, %v1588
          %v1619 = vadd.f32 %v1491, %v1590
          %v1620 = vadd.f32 %v1492, %v1592
          %v1621 = vadd.f32 %v1493, %v1594
          %v1622 = vadd.f32 %v1494, %v1596
          %v1623 = vadd.f32 %v1495, %v1598
          %v1624 = vadd.f32 %v1496, %v1600
          %v1625 = vadd.f32 %v1497, %v1602
          %v1626 = vadd.f32 %v1498, %v1604
          %v1627 = vadd.f32 %v1499, %v1606
          %v1628 = vadd.f32 %v1500, %v1608
          %v1629 = vadd.f32 %v1501, %v1610
          %v1630 = vadd.f32 %v1502, %v1612
          %v1631 = vadd.f32 %v1503, %v1614
          %v1632 = vadd.f32 %v1504, %v1616
          %v1633 = vlog2.pop %v1617
          %v1634 = vmul.f32 %v1633, 0.6931472
          %v1635 = vlog2.pop %v1618
          %v1636 = vmul.f32 %v1635, 0.6931472
          %v1637 = vlog2.pop %v1619
          %v1638 = vmul.f32 %v1637, 0.6931472
          %v1639 = vlog2.pop %v1620
          %v1640 = vmul.f32 %v1639, 0.6931472
          %v1641 = vlog2.pop %v1621
          %v1642 = vmul.f32 %v1641, 0.6931472
          %v1643 = vlog2.pop %v1622
          %v1644 = vmul.f32 %v1643, 0.6931472
          %v1645 = vlog2.pop %v1623
          %v1646 = vmul.f32 %v1645, 0.6931472
          %v1647 = vlog2.pop %v1624
          %v1648 = vmul.f32 %v1647, 0.6931472
          %v1649 = vlog2.pop %v1625
          %v1650 = vmul.f32 %v1649, 0.6931472
          %v1651 = vlog2.pop %v1626
          %v1652 = vmul.f32 %v1651, 0.6931472
          %v1653 = vlog2.pop %v1627
          %v1654 = vmul.f32 %v1653, 0.6931472
          %v1655 = vlog2.pop %v1628
          %v1656 = vmul.f32 %v1655, 0.6931472
          %v1657 = vlog2.pop %v1629
          %v1658 = vmul.f32 %v1657, 0.6931472
          %v1659 = vlog2.pop %v1630
          %v1660 = vmul.f32 %v1659, 0.6931472
          %v1661 = vlog2.pop %v1631
          %v1662 = vmul.f32 %v1661, 0.6931472
          %v1663 = vlog2.pop %v1632
          %v1664 = vmul.f32 %v1663, 0.6931472
          %v1665 = vsub.f32 0.0, %v1634
          %v1666 = vsub.f32 0.0, %v1636
          %v1667 = vsub.f32 0.0, %v1638
          %v1668 = vsub.f32 0.0, %v1640
          %v1669 = vsub.f32 0.0, %v1642
          %v1670 = vsub.f32 0.0, %v1644
          %v1671 = vsub.f32 0.0, %v1646
          %v1672 = vsub.f32 0.0, %v1648
          %v1673 = vsub.f32 0.0, %v1650
          %v1674 = vsub.f32 0.0, %v1652
          %v1675 = vsub.f32 0.0, %v1654
          %v1676 = vsub.f32 0.0, %v1656
          %v1677 = vsub.f32 0.0, %v1658
          %v1678 = vsub.f32 0.0, %v1660
          %v1679 = vsub.f32 0.0, %v1662
          %v1680 = vsub.f32 0.0, %v1664
          %v1681 = vmul.f32 %v1617, %v1617
          %v1682 = vmul.f32 %v1618, %v1618
          %v1683 = vmul.f32 %v1619, %v1619
          %v1684 = vmul.f32 %v1620, %v1620
          %v1685 = vmul.f32 %v1621, %v1621
          %v1686 = vmul.f32 %v1622, %v1622
          %v1687 = vmul.f32 %v1623, %v1623
          %v1688 = vmul.f32 %v1624, %v1624
          %v1689 = vmul.f32 %v1625, %v1625
          %v1690 = vmul.f32 %v1626, %v1626
          %v1691 = vmul.f32 %v1627, %v1627
          %v1692 = vmul.f32 %v1628, %v1628
          %v1693 = vmul.f32 %v1629, %v1629
          %v1694 = vmul.f32 %v1630, %v1630
          %v1695 = vmul.f32 %v1631, %v1631
          %v1696 = vmul.f32 %v1632, %v1632
          %v1697 = vmul.f32 %v1457, %v1457
          %v1698 = vmul.f32 %v1458, %v1458
          %v1699 = vmul.f32 %v1459, %v1459
          %v1700 = vmul.f32 %v1460, %v1460
          %v1701 = vmul.f32 %v1461, %v1461
          %v1702 = vmul.f32 %v1462, %v1462
          %v1703 = vmul.f32 %v1463, %v1463
          %v1704 = vmul.f32 %v1464, %v1464
          %v1705 = vmul.f32 %v1465, %v1465
          %v1706 = vmul.f32 %v1466, %v1466
          %v1707 = vmul.f32 %v1467, %v1467
          %v1708 = vmul.f32 %v1468, %v1468
          %v1709 = vmul.f32 %v1469, %v1469
          %v1710 = vmul.f32 %v1470, %v1470
          %v1711 = vmul.f32 %v1471, %v1471
          %v1712 = vmul.f32 %v1472, %v1472
          %v1713 = vadd.f32 %v1681, %v1697
          %v1714 = vadd.f32 %v1682, %v1698
          %v1715 = vadd.f32 %v1683, %v1699
          %v1716 = vadd.f32 %v1684, %v1700
          %v1717 = vadd.f32 %v1685, %v1701
          %v1718 = vadd.f32 %v1686, %v1702
          %v1719 = vadd.f32 %v1687, %v1703
          %v1720 = vadd.f32 %v1688, %v1704
          %v1721 = vadd.f32 %v1689, %v1705
          %v1722 = vadd.f32 %v1690, %v1706
          %v1723 = vadd.f32 %v1691, %v1707
          %v1724 = vadd.f32 %v1692, %v1708
          %v1725 = vadd.f32 %v1693, %v1709
          %v1726 = vadd.f32 %v1694, %v1710
          %v1727 = vadd.f32 %v1695, %v1711
          %v1728 = vadd.f32 %v1696, %v1712
          %v1729 = vmul.f32 %v1713, 0.5
          %v1730 = vmul.f32 %v1714, 0.5
          %v1731 = vmul.f32 %v1715, 0.5
          %v1732 = vmul.f32 %v1716, 0.5
          %v1733 = vmul.f32 %v1717, 0.5
          %v1734 = vmul.f32 %v1718, 0.5
          %v1735 = vmul.f32 %v1719, 0.5
          %v1736 = vmul.f32 %v1720, 0.5
          %v1737 = vmul.f32 %v1721, 0.5
          %v1738 = vmul.f32 %v1722, 0.5
          %v1739 = vmul.f32 %v1723, 0.5
          %v1740 = vmul.f32 %v1724, 0.5
          %v1741 = vmul.f32 %v1725, 0.5
          %v1742 = vmul.f32 %v1726, 0.5
          %v1743 = vmul.f32 %v1727, 0.5
          %v1744 = vmul.f32 %v1728, 0.5
          %v1745 = vadd.f32 %v1665, %v1729
          %v1746 = vadd.f32 %v1666, %v1730
          %v1747 = vadd.f32 %v1667, %v1731
          %v1748 = vadd.f32 %v1668, %v1732
          %v1749 = vadd.f32 %v1669, %v1733
          %v1750 = vadd.f32 %v1670, %v1734
          %v1751 = vadd.f32 %v1671, %v1735
          %v1752 = vadd.f32 %v1672, %v1736
          %v1753 = vadd.f32 %v1673, %v1737
          %v1754 = vadd.f32 %v1674, %v1738
          %v1755 = vadd.f32 %v1675, %v1739
          %v1756 = vadd.f32 %v1676, %v1740
          %v1757 = vadd.f32 %v1677, %v1741
          %v1758 = vadd.f32 %v1678, %v1742
          %v1759 = vadd.f32 %v1679, %v1743
          %v1760 = vadd.f32 %v1680, %v1744
          %v1761 = vsub.f32 %v1745, 0.5
          %v1762 = vsub.f32 %v1746, 0.5
          %v1763 = vsub.f32 %v1747, 0.5
          %v1764 = vsub.f32 %v1748, 0.5
          %v1765 = vsub.f32 %v1749, 0.5
          %v1766 = vsub.f32 %v1750, 0.5
          %v1767 = vsub.f32 %v1751, 0.5
          %v1768 = vsub.f32 %v1752, 0.5
          %v1769 = vsub.f32 %v1753, 0.5
          %v1770 = vsub.f32 %v1754, 0.5
          %v1771 = vsub.f32 %v1755, 0.5
          %v1772 = vsub.f32 %v1756, 0.5
          %v1773 = vsub.f32 %v1757, 0.5
          %v1774 = vsub.f32 %v1758, 0.5
          %v1775 = vsub.f32 %v1759, 0.5
          %v1776 = vsub.f32 %v1760, 0.5
          %vm1777 = vcmp.lt.s32.totalorder %v936, 8
          %vm1778 = vmand %vm919, %vm1777
          %vm1779 = vmand %vm920, %vm1777
          %vm1780 = vmand %vm921, %vm1777
          %vm1781 = vmand %vm922, %vm1777
          %vm1782 = vmand %vm923, %vm1777
          %vm1783 = vmand %vm924, %vm1777
          %vm1784 = vmand %vm925, %vm1777
          %vm1785 = vmand %vm926, %vm1777
          %vm1786 = vmand %vm927, %vm1777
          %vm1787 = vmand %vm928, %vm1777
          %vm1788 = vmand %vm929, %vm1777
          %vm1789 = vmand %vm930, %vm1777
          %vm1790 = vmand %vm931, %vm1777
          %vm1791 = vmand %vm932, %vm1777
          %vm1792 = vmand %vm933, %vm1777
          %vm1793 = vmand %vm934, %vm1777
          %v1794 = vsel %vm1778, %v1761, 0.0
          %v1795 = vsel %vm1779, %v1762, 0.0
          %v1796 = vsel %vm1780, %v1763, 0.0
          %v1797 = vsel %vm1781, %v1764, 0.0
          %v1798 = vsel %vm1782, %v1765, 0.0
          %v1799 = vsel %vm1783, %v1766, 0.0
          %v1800 = vsel %vm1784, %v1767, 0.0
          %v1801 = vsel %vm1785, %v1768, 0.0
          %v1802 = vsel %vm1786, %v1769, 0.0
          %v1803 = vsel %vm1787, %v1770, 0.0
          %v1804 = vsel %vm1788, %v1771, 0.0
          %v1805 = vsel %vm1789, %v1772, 0.0
          %v1806 = vsel %vm1790, %v1773, 0.0
          %v1807 = vsel %vm1791, %v1774, 0.0
          %v1808 = vsel %vm1792, %v1775, 0.0
          %v1809 = vsel %vm1793, %v1776, 0.0
          %v1810 = vadd.f32 %v1794, %v1795
          %v1811 = vadd.f32 %v1810, %v1796
          %v1812 = vadd.f32 %v1811, %v1797
          %v1813 = vadd.f32 %v1812, %v1798
          %v1814 = vadd.f32 %v1813, %v1799
          %v1815 = vadd.f32 %v1814, %v1800
          %v1816 = vadd.f32 %v1815, %v1801
          %v1817 = vadd.f32 %v1816, %v1802
          %v1818 = vadd.f32 %v1817, %v1803
          %v1819 = vadd.f32 %v1818, %v1804
          %v1820 = vadd.f32 %v1819, %v1805
          %v1821 = vadd.f32 %v1820, %v1806
          %v1822 = vadd.f32 %v1821, %v1807
          %v1823 = vadd.f32 %v1822, %v1808
          %v1824 = vadd.f32 %v1823, %v1809
          %1825 = vadd.xlane.f32.xlu0 %v1824
          %v1826 = vpop.xlane.xlu0 %1825
          %v1827 = vrot.slane %v1826, 4
          %v1828 = vadd.f32 %v1826, %v1827
          %v1829 = vrot.slane %v1828, 2
          %v1830 = vadd.f32 %v1828, %v1829
          %v1831 = vrot.slane %v1830, 1
          %v1832 = vadd.f32 %v1830, %v1831
          %s1833 = vtos %v1832
          %s1834 = sadd.f32 %s1456, %s1833
          %v1835 = vld [vmem:[%s7 + $0x2] sm:$0x1]
          %v1836 = vld [vmem:[%s8 + $0x2] sm:$0x1]
          %v1837 = vmax.f32 %v1836, 0.0
          %v1838 = vand.u32 2147483647, %v1836
          %v1839 = vsub.f32 0.0, %v1838
          %v1840 = vmul.f32 %v1839, 1.442695
          %v1841 = vpow.pop %v1840
          %v1842 = vadd.f32 %v1841, 1.0
          %v1843 = vlog2.pop %v1842
          %v1844 = vmul.f32 %v1843, 0.6931472
          %v1845 = vadd.f32 %v1837, %v1844
          %v1846 = vlog2.pop %v1845
          %v1847 = vmul.f32 %v1846, 0.6931472
          %v1848 = vsub.f32 0.0, %v1847
          %v1849 = vmul.f32 %v1845, %v1845
          %v1850 = vmul.f32 %v1835, %v1835
          %v1851 = vadd.f32 %v1849, %v1850
          %v1852 = vmul.f32 %v1851, 0.5
          %v1853 = vadd.f32 %v1848, %v1852
          %v1854 = vsub.f32 %v1853, 0.5
          %vm1855 = vmand %vm1015, %vm1777
          %v1856 = vsel %vm1855, %v1854, 0.0
          %v1857 = vsel %vm1018, %v1856, 0.0
          %1858 = vadd.xlane.f32.xlu0 %v1857
          %v1859 = vpop.xlane.xlu0 %1858
          %v1860 = vrot.slane %v1859, 4
          %v1861 = vadd.f32 %v1859, %v1860
          %v1862 = vrot.slane %v1861, 2
          %v1863 = vadd.f32 %v1861, %v1862
          %v1864 = vrot.slane %v1863, 1
          %v1865 = vadd.f32 %v1863, %v1864
          %s1866 = vtos %v1865
          %s1867 = sadd.f32 %s1834, %s1866
          %v1868 = vstv %s1867
          %v1869 = vadd.f32 %v1868, 0.0
          %1870 = vst [vmem:[%s440] sm:$0xff] %v1869
        $region76: #{_lambda_.1} parent=55 // pred_fallthru
          _
        %p1871 = scmp.ne.s32.totalorder %s25, 0
        // Predicated region
        $region77: #{_lambda_.1} parent=55 // pred_check
          %p1872 = pneg %p1871
        $region78: #{_lambda_.1} parent=55 // pred_check_branch
          %1874 = sbr.rel (%p1872) target = $region80
        $region79: #{_lambda_.1} parent=55 // pred_region
          %1875 = vst [vmem:[%s440] sm:$0xff] 0.0
        $region80: #{_lambda_.1} parent=55 // pred_fallthru
          _
        %s1876 = smul.u32 2, %s25
        %p1877 = scmp.lt.s32.totalorder %s1876, 5
        %s1878 = scalar_select %p1877, %s1876, 5
        %s1879 = smul.addr %s1878, 8
        %s1880 = scalar_lea.vmem %s9, %s1879
        %p1881 = scmp.lt.s32.totalorder %s25, 2
        %s1882 = scalar_select %p1881, %s25, 2
        %s1883 = smul.addr %s1882, 8
        %s1884 = scalar_lea.vmem %s10, %s1883
        // Predicated region
        $region81: #{_lambda_.1} parent=55 // pred_check
          %p1885 = pneg %p237
        $region82: #{_lambda_.1} parent=55 // pred_check_branch
          %1887 = sbr.rel (%p1885) target = $region84
        $region83: #{_lambda_.1} parent=55 // pred_region
          %s1888 = smul.u32 2, %s25
        $region84: #{_lambda_.1} parent=55 // pred_fallthru
          _
        // Predicated region
        $region85: #{_lambda_.1} parent=55 // pred_check
          %p1889 = pneg %p263
        $region86: #{_lambda_.1} parent=55 // pred_check_branch
          %1891 = sbr.rel (%p1889) target = $region88
        $region87: #{_lambda_.1} parent=55 // pred_region
          _
        $region88: #{_lambda_.1} parent=55 // pred_fallthru
          _
      $region56: #{_lambda_.1} parent=5 // pred_fallthru
        _
      %p1892 = scmp.le.s32.totalorder 2, %s20
      // Predicated region
      $region89: #{_lambda_.1} parent=5 // pred_check
        %p1893 = pneg %p1892
      $region90: #{_lambda_.1} parent=5 // pred_check_branch
        %1895 = sbr.rel (%p1893) target = $region92
      $region91: #{_lambda_.1} parent=5 // pred_region
        %s1896 = ssub.s32 %s20, 2
        // Predicated region
        $region93: #{_lambda_.1} parent=91 // pred_check
          %p1897 = pneg %p243
        $region94: #{_lambda_.1} parent=91 // pred_check_branch
          %1899 = sbr.rel (%p1897) target = $region96
        $region95: #{_lambda_.1} parent=91 // pred_region
          %s1900 = smul.u32 2, %s26
          %p1901 = scmp.lt.s32.totalorder %s1900, 5
          %s1902 = scalar_select %p1901, %s1900, 5
          %s1903 = smul.addr %s1902, 8
          %s1904 = scalar_lea.vmem %s9, %s1903
        $region96: #{_lambda_.1} parent=91 // pred_fallthru
          _
        // Predicated region
        $region97: #{_lambda_.1} parent=91 // pred_check
          %p1905 = pneg %p269
        $region98: #{_lambda_.1} parent=91 // pred_check_branch
          %1907 = sbr.rel (%p1905) target = $region100
        $region99: #{_lambda_.1} parent=91 // pred_region
          %p1908 = scmp.lt.s32.totalorder %s26, 2
          %s1909 = scalar_select %p1908, %s26, 2
          %s1910 = smul.addr %s1909, 8
          %s1911 = scalar_lea.vmem %s10, %s1910
        $region100: #{_lambda_.1} parent=91 // pred_fallthru
          _
      $region92: #{_lambda_.1} parent=5 // pred_fallthru
        _
    $region6: #{_lambda_.1} parent=1 // loop_footer
      %s24 = sadd.s32 1, %s20
    $region7: #{_lambda_.1} parent=1 // loop_footer_branch
      %19 = sbr.rel target = $region3
    $region8: #{_lambda_.1} parent=1 // loop_exit
      _
    %1912 = vsyncpa [#allocation3], 1
    %s1913 = scalar_lea.sflag [#allocation3], 1
    %1914 = vsyncpa %s1913, 1
    %1915 = vsyncpa [#allocation5], 1
    %1916 = vsyncpa [#allocation8], 1

</llo_original>
